<compile_context>
chip_gen: v5e
topology: v5e:2x2
jax: 0.10.0
libtpu: 0.0.40
codegen_flags: <defaults>
</compile_context>

<pallas_src>
import jax
import jax.numpy as jnp
from jax import lax
from jax.experimental import pallas as pl
from jax.experimental.pallas import tpu as pltpu


def _round_up(x, m):
    return (x + m - 1) // m * m


def _make_dsconv_kernel(KH, KW, Cin, Cout, H, W, H_out, W_out, Wp,
                        padding, dilation, Lpad):
    """Kernel for one image per grid step.

    x_ref     : (1, Cin, H, W)        raw (unpadded) NCHW image
    w_ref     : (Cout, KH*KW*Cin)     folded depthwise*pointwise weights (lane-dense)
    o_ref     : (1, Cout, H_out*W_out) flat, lane-dense valid output
    pad_ref   : (Cin, Lin_pad)        VMEM scratch: zero-padded image, rows flattened
    stack_ref : (KH*KW*Cin, Lpad)     VMEM scratch: stacked shifted views (matmul RHS)
    """

    def kernel(x_ref, w_ref, o_ref, pad_ref, stack_ref):
        # ---- 1. Fused zero-padding: memset the scratch (borders + tail stay zero),
        #         then scatter the unpadded input rows at their padded flat offsets.
        pad_ref[...] = jnp.zeros_like(pad_ref)
        for h in range(H):                                   # static, small H
            col0 = (h + padding) * Wp + padding
            pad_ref[:, col0:col0 + W] = x_ref[0, :, h, :]

        # ---- 2. Build the stacked RHS: one lane-shifted copy per tap.
        #         Row (t*Cin + c) = padded image of channel c shifted by tap t.
        for kh in range(KH):
            for kw in range(KW):
                t = kh * KW + kw
                s = (kh * Wp + kw) * dilation                # flat tap shift
                stack_ref[t * Cin:(t + 1) * Cin, :] = pad_ref[:, s:s + Lpad]

        # ---- 3. Single MXU matmul, contraction = KH*KW*Cin, f32 accumulation.
        acc = jnp.dot(w_ref[...], stack_ref[...],
                      preferred_element_type=jnp.float32)    # (Cout, Lpad)

        # ---- 4. Compact valid columns row by row into the flat lane-dense output
        #         (garbage columns w >= W_out of each Wp-wide row are never stored,
        #          so no wrapper crop / extra HBM pass is needed).
        for h in range(H_out):                               # static, small H_out
            o_ref[0, :, h * W_out:(h + 1) * W_out] = (
                acc[:, h * Wp:h * Wp + W_out].astype(o_ref.dtype))

    return kernel


def dsconv_pallas(x_nchw, dw_torch, pw_torch, *, stride=1, padding=0, dilation=1):
    """Depthwise-separable conv matching the PyTorch DSConv forward.

    x_nchw   : (N, Cin, H, W)
    dw_torch : (Cin, 1, KH, KW)    -- nn.Conv2d(groups=Cin) weight
    pw_torch : (Cout, Cin, 1, 1)   -- nn.Conv2d 1x1 weight
    returns  : (N, Cout, H_out, W_out)  NCHW, same as the PyTorch module
    """
    assert stride == 1, "this kernel implements stride=1"

    N, Cin, H, W = x_nchw.shape
    KH, KW = int(dw_torch.shape[2]), int(dw_torch.shape[3])
    Cout = int(pw_torch.shape[0])
    T = KH * KW

    Hp, Wp = H + 2 * padding, W + 2 * padding
    H_out = Hp - dilation * (KH - 1)
    W_out = Wp - dilation * (KW - 1)
    assert H_out > 0 and W_out > 0

    L = H_out * Wp                                  # flat accumulator length (lane axis)
    Lpad = _round_up(L, 128)                        # lane-aligned stacked-RHS width
    max_shift = ((KH - 1) * Wp + (KW - 1)) * dilation
    Lin_pad = _round_up(max_shift + Lpad, 128)      # padded-image scratch length
    assert Lin_pad >= Hp * Wp

    # --- Fold depthwise into pointwise and lay out lane-dense:
    #     w_fold[o, t*Cin + c] = pw[o, c] * dw[c, kh, kw],  t = kh*KW + kw.
    dwt = jnp.transpose(dw_torch[:, 0, :, :], (1, 2, 0)).reshape(T, Cin)   # (T, Cin)
    pw = pw_torch[:, :, 0, 0]                                              # (Cout, Cin)
    w_fold = (pw[:, None, :] * dwt[None, :, :]).reshape(Cout, T * Cin)
    w_fold = w_fold.astype(x_nchw.dtype)

    # --- Explicit VMEM budget (double-buffered blocks + scratches + f32 acc).
    itemsize = jnp.dtype(x_nchw.dtype).itemsize
    vmem_est = (2 * (Cin * H * W + Cout * T * Cin + Cout * H_out * W_out) * itemsize
                + (Cin * Lin_pad + T * Cin * Lpad) * itemsize
                + Cout * Lpad * 4)
    vmem_limit = int(min(32 * 1024 * 1024, max(4 * 1024 * 1024, 4 * vmem_est)))

    kernel = _make_dsconv_kernel(KH, KW, Cin, Cout, H, W, H_out, W_out, Wp,
                                 padding, dilation, Lpad)

    out_flat = pl.pallas_call(
        kernel,
        out_shape=jax.ShapeDtypeStruct((N, Cout, H_out * W_out), x_nchw.dtype),
        grid_spec=pltpu.PrefetchScalarGridSpec(
            num_scalar_prefetch=0,
            grid=(N,),                               # one image per step, batch on the grid
            in_specs=[
                pl.BlockSpec((1, Cin, H, W), lambda n: (n, 0, 0, 0)),
                pl.BlockSpec((Cout, T * Cin), lambda n: (0, 0)),
            ],
            out_specs=pl.BlockSpec((1, Cout, H_out * W_out), lambda n: (n, 0, 0)),
            scratch_shapes=[
                pltpu.VMEM((Cin, Lin_pad), x_nchw.dtype),
                pltpu.VMEM((T * Cin, Lpad), x_nchw.dtype),
            ],
        ),
        compiler_params=pltpu.CompilerParams(
            dimension_semantics=("parallel",),
            vmem_limit_bytes=vmem_limit,
        ),
    )(x_nchw, w_fold)

    # Trailing-dim split of a contiguous flat axis: free (no HBM pass), already NCHW.
    return out_flat.reshape(N, Cout, H_out, W_out)


def _reference(x_nchw, dw_torch, pw_torch, *, stride=1, padding=0, dilation=1):
    Cin = x_nchw.shape[1]
    y = lax.conv_general_dilated(
        x_nchw, dw_torch,
        window_strides=(stride, stride),
        padding=((padding, padding), (padding, padding)),
        rhs_dilation=(dilation, dilation),
        dimension_numbers=("NCHW", "OIHW", "NCHW"),
        feature_group_count=Cin,
    )
    y = lax.conv_general_dilated(
        y, pw_torch,
        window_strides=(1, 1),
        padding=((0, 0), (0, 0)),
        dimension_numbers=("NCHW", "OIHW", "NCHW"),
    )
    return y


if __name__ == "__main__":
    key = jax.random.PRNGKey(0)
    k_x, k_dw, k_pw = jax.random.split(key, 3)

    # Module config: DSConv(in_channels=4, out_channels=8, kernel_size=3, padding=1)
    N, Cin, H, W = 2, 4, 16, 16
    Cout, K = 8, 3
    padding, dilation, stride = 1, 1, 1

    x = jax.random.normal(k_x, (N, Cin, H, W), dtype=jnp.float32)
    dw_w = jax.random.normal(k_dw, (Cin, 1, K, K), dtype=jnp.float32) * 0.1      # conv1.weight
    pw_w = jax.random.normal(k_pw, (Cout, Cin, 1, 1), dtype=jnp.float32) * 0.1   # pointwise.weight

    out = dsconv_pallas(x, dw_w, pw_w, stride=stride, padding=padding, dilation=dilation)
    out = jax.block_until_ready(out)

    ref = _reference(x, dw_w, pw_w, stride=stride, padding=padding, dilation=dilation)
    assert out.shape == (N, Cout, H, W), out.shape
    assert jnp.allclose(out, ref, atol=1e-4, rtol=1e-4), "mismatch vs reference conv"

    print("KERNEL_OK")
</pallas_src>

<mosaic_0001>
module attributes {stable_mosaic.version = 11 : i64} {
  func.func @kernel(%arg0: i32, %arg1: memref<1x4x16x16xf32, #tpu.memory_space<vmem>>, %arg2: memref<8x36xf32, #tpu.memory_space<vmem>>, %arg3: memref<1x8x256xf32, #tpu.memory_space<vmem>>, %arg4: memref<4x512xf32, #tpu.memory_space<vmem>>, %arg5: memref<36x384xf32, #tpu.memory_space<vmem>>) attributes {dimension_semantics = [#tpu.dimension_semantics<parallel>], iteration_bounds = array<i64: 2>, scalar_prefetch = 0 : i64, scratch_operands = 2 : i64, tpu.core_type = #tpu.core_type<tc>, window_params = [{transform_indices = @transform_0, window_bounds = array<i64: 1, 4, 16, 16>}, {pipeline_mode = #tpu.pipeline_mode<synchronous>, transform_indices = @transform_1, window_bounds = array<i64: 8, 36>}, {transform_indices = @transform_2, window_bounds = array<i64: 1, 8, 256>}]} {
    %cst = arith.constant 0.000000e+00 : f32
    %0 = vector.broadcast %cst : f32 to vector<4x512xf32>
    %c0 = arith.constant 0 : index
    %c0_0 = arith.constant 0 : index
    %1 = vector.load %arg4[%c0, %c0_0] : memref<4x512xf32, #tpu.memory_space<vmem>>, vector<4x512xf32>
    tpu.vector_store %arg4[%c0, %c0_0], %0 {strides = array<i32>} : memref<4x512xf32, #tpu.memory_space<vmem>>, vector<4x512xf32>,
    %c0_1 = arith.constant 0 : index
    %c0_2 = arith.constant 0 : index
    %c0_3 = arith.constant 0 : index
    %c0_4 = arith.constant 0 : index
    %2 = vector.load %arg1[%c0_1, %c0_2, %c0_3, %c0_4] : memref<1x4x16x16xf32, #tpu.memory_space<vmem>>, vector<1x4x1x16xf32>
    %3 = vector.shape_cast %2 : vector<1x4x1x16xf32> to vector<4x16xf32>
    %c0_5 = arith.constant 0 : index
    %c19 = arith.constant 19 : index
    %4 = vector.load %arg4[%c0_5, %c19] : memref<4x512xf32, #tpu.memory_space<vmem>>, vector<4x16xf32>
    tpu.vector_store %arg4[%c0_5, %c19], %3 {strides = array<i32>} : memref<4x512xf32, #tpu.memory_space<vmem>>, vector<4x16xf32>,
    %c0_6 = arith.constant 0 : index
    %c0_7 = arith.constant 0 : index
    %c1 = arith.constant 1 : index
    %c0_8 = arith.constant 0 : index
    %5 = vector.load %arg1[%c0_6, %c0_7, %c1, %c0_8] : memref<1x4x16x16xf32, #tpu.memory_space<vmem>>, vector<1x4x1x16xf32>
    %6 = vector.shape_cast %5 : vector<1x4x1x16xf32> to vector<4x16xf32>
    %c0_9 = arith.constant 0 : index
    %c37 = arith.constant 37 : index
    %7 = vector.load %arg4[%c0_9, %c37] : memref<4x512xf32, #tpu.memory_space<vmem>>, vector<4x16xf32>
    tpu.vector_store %arg4[%c0_9, %c37], %6 {strides = array<i32>} : memref<4x512xf32, #tpu.memory_space<vmem>>, vector<4x16xf32>,
    %c0_10 = arith.constant 0 : index
    %c0_11 = arith.constant 0 : index
    %c2 = arith.constant 2 : index
    %c0_12 = arith.constant 0 : index
    %8 = vector.load %arg1[%c0_10, %c0_11, %c2, %c0_12] : memref<1x4x16x16xf32, #tpu.memory_space<vmem>>, vector<1x4x1x16xf32>
    %9 = vector.shape_cast %8 : vector<1x4x1x16xf32> to vector<4x16xf32>
    %c0_13 = arith.constant 0 : index
    %c55 = arith.constant 55 : index
    %10 = vector.load %arg4[%c0_13, %c55] : memref<4x512xf32, #tpu.memory_space<vmem>>, vector<4x16xf32>
    tpu.vector_store %arg4[%c0_13, %c55], %9 {strides = array<i32>} : memref<4x512xf32, #tpu.memory_space<vmem>>, vector<4x16xf32>,
    %c0_14 = arith.constant 0 : index
    %c0_15 = arith.constant 0 : index
    %c3 = arith.constant 3 : index
    %c0_16 = arith.constant 0 : index
    %11 = vector.load %arg1[%c0_14, %c0_15, %c3, %c0_16] : memref<1x4x16x16xf32, #tpu.memory_space<vmem>>, vector<1x4x1x16xf32>
    %12 = vector.shape_cast %11 : vector<1x4x1x16xf32> to vector<4x16xf32>
    %c0_17 = arith.constant 0 : index
    %c73 = arith.constant 73 : index
    %13 = vector.load %arg4[%c0_17, %c73] : memref<4x512xf32, #tpu.memory_space<vmem>>, vector<4x16xf32>
    tpu.vector_store %arg4[%c0_17, %c73], %12 {strides = array<i32>} : memref<4x512xf32, #tpu.memory_space<vmem>>, vector<4x16xf32>,
    %c0_18 = arith.constant 0 : index
    %c0_19 = arith.constant 0 : index
    %c4 = arith.constant 4 : index
    %c0_20 = arith.constant 0 : index
    %14 = vector.load %arg1[%c0_18, %c0_19, %c4, %c0_20] : memref<1x4x16x16xf32, #tpu.memory_space<vmem>>, vector<1x4x1x16xf32>
    %15 = vector.shape_cast %14 : vector<1x4x1x16xf32> to vector<4x16xf32>
    %c0_21 = arith.constant 0 : index
    %c91 = arith.constant 91 : index
    %16 = vector.load %arg4[%c0_21, %c91] : memref<4x512xf32, #tpu.memory_space<vmem>>, vector<4x16xf32>
    tpu.vector_store %arg4[%c0_21, %c91], %15 {strides = array<i32>} : memref<4x512xf32, #tpu.memory_space<vmem>>, vector<4x16xf32>,
    %c0_22 = arith.constant 0 : index
    %c0_23 = arith.constant 0 : index
    %c5 = arith.constant 5 : index
    %c0_24 = arith.constant 0 : index
    %17 = vector.load %arg1[%c0_22, %c0_23, %c5, %c0_24] : memref<1x4x16x16xf32, #tpu.memory_space<vmem>>, vector<1x4x1x16xf32>
    %18 = vector.shape_cast %17 : vector<1x4x1x16xf32> to vector<4x16xf32>
    %c0_25 = arith.constant 0 : index
    %c109 = arith.constant 109 : index
    %19 = vector.load %arg4[%c0_25, %c109] : memref<4x512xf32, #tpu.memory_space<vmem>>, vector<4x16xf32>
    tpu.vector_store %arg4[%c0_25, %c109], %18 {strides = array<i32>} : memref<4x512xf32, #tpu.memory_space<vmem>>, vector<4x16xf32>,
    %c0_26 = arith.constant 0 : index
    %c0_27 = arith.constant 0 : index
    %c6 = arith.constant 6 : index
    %c0_28 = arith.constant 0 : index
    %20 = vector.load %arg1[%c0_26, %c0_27, %c6, %c0_28] : memref<1x4x16x16xf32, #tpu.memory_space<vmem>>, vector<1x4x1x16xf32>
    %21 = vector.shape_cast %20 : vector<1x4x1x16xf32> to vector<4x16xf32>
    %c0_29 = arith.constant 0 : index
    %c127 = arith.constant 127 : index
    %22 = vector.load %arg4[%c0_29, %c127] : memref<4x512xf32, #tpu.memory_space<vmem>>, vector<4x16xf32>
    tpu.vector_store %arg4[%c0_29, %c127], %21 {strides = array<i32>} : memref<4x512xf32, #tpu.memory_space<vmem>>, vector<4x16xf32>,
    %c0_30 = arith.constant 0 : index
    %c0_31 = arith.constant 0 : index
    %c7 = arith.constant 7 : index
    %c0_32 = arith.constant 0 : index
    %23 = vector.load %arg1[%c0_30, %c0_31, %c7, %c0_32] : memref<1x4x16x16xf32, #tpu.memory_space<vmem>>, vector<1x4x1x16xf32>
    %24 = vector.shape_cast %23 : vector<1x4x1x16xf32> to vector<4x16xf32>
    %c0_33 = arith.constant 0 : index
    %c145 = arith.constant 145 : index
    %25 = vector.load %arg4[%c0_33, %c145] : memref<4x512xf32, #tpu.memory_space<vmem>>, vector<4x16xf32>
    tpu.vector_store %arg4[%c0_33, %c145], %24 {strides = array<i32>} : memref<4x512xf32, #tpu.memory_space<vmem>>, vector<4x16xf32>,
    %c0_34 = arith.constant 0 : index
    %c0_35 = arith.constant 0 : index
    %c8 = arith.constant 8 : index
    %c0_36 = arith.constant 0 : index
    %26 = vector.load %arg1[%c0_34, %c0_35, %c8, %c0_36] : memref<1x4x16x16xf32, #tpu.memory_space<vmem>>, vector<1x4x1x16xf32>
    %27 = vector.shape_cast %26 : vector<1x4x1x16xf32> to vector<4x16xf32>
    %c0_37 = arith.constant 0 : index
    %c163 = arith.constant 163 : index
    %28 = vector.load %arg4[%c0_37, %c163] : memref<4x512xf32, #tpu.memory_space<vmem>>, vector<4x16xf32>
    tpu.vector_store %arg4[%c0_37, %c163], %27 {strides = array<i32>} : memref<4x512xf32, #tpu.memory_space<vmem>>, vector<4x16xf32>,
    %c0_38 = arith.constant 0 : index
    %c0_39 = arith.constant 0 : index
    %c9 = arith.constant 9 : index
    %c0_40 = arith.constant 0 : index
    %29 = vector.load %arg1[%c0_38, %c0_39, %c9, %c0_40] : memref<1x4x16x16xf32, #tpu.memory_space<vmem>>, vector<1x4x1x16xf32>
    %30 = vector.shape_cast %29 : vector<1x4x1x16xf32> to vector<4x16xf32>
    %c0_41 = arith.constant 0 : index
    %c181 = arith.constant 181 : index
    %31 = vector.load %arg4[%c0_41, %c181] : memref<4x512xf32, #tpu.memory_space<vmem>>, vector<4x16xf32>
    tpu.vector_store %arg4[%c0_41, %c181], %30 {strides = array<i32>} : memref<4x512xf32, #tpu.memory_space<vmem>>, vector<4x16xf32>,
    %c0_42 = arith.constant 0 : index
    %c0_43 = arith.constant 0 : index
    %c10 = arith.constant 10 : index
    %c0_44 = arith.constant 0 : index
    %32 = vector.load %arg1[%c0_42, %c0_43, %c10, %c0_44] : memref<1x4x16x16xf32, #tpu.memory_space<vmem>>, vector<1x4x1x16xf32>
    %33 = vector.shape_cast %32 : vector<1x4x1x16xf32> to vector<4x16xf32>
    %c0_45 = arith.constant 0 : index
    %c199 = arith.constant 199 : index
    %34 = vector.load %arg4[%c0_45, %c199] : memref<4x512xf32, #tpu.memory_space<vmem>>, vector<4x16xf32>
    tpu.vector_store %arg4[%c0_45, %c199], %33 {strides = array<i32>} : memref<4x512xf32, #tpu.memory_space<vmem>>, vector<4x16xf32>,
    %c0_46 = arith.constant 0 : index
    %c0_47 = arith.constant 0 : index
    %c11 = arith.constant 11 : index
    %c0_48 = arith.constant 0 : index
    %35 = vector.load %arg1[%c0_46, %c0_47, %c11, %c0_48] : memref<1x4x16x16xf32, #tpu.memory_space<vmem>>, vector<1x4x1x16xf32>
    %36 = vector.shape_cast %35 : vector<1x4x1x16xf32> to vector<4x16xf32>
    %c0_49 = arith.constant 0 : index
    %c217 = arith.constant 217 : index
    %37 = vector.load %arg4[%c0_49, %c217] : memref<4x512xf32, #tpu.memory_space<vmem>>, vector<4x16xf32>
    tpu.vector_store %arg4[%c0_49, %c217], %36 {strides = array<i32>} : memref<4x512xf32, #tpu.memory_space<vmem>>, vector<4x16xf32>,
    %c0_50 = arith.constant 0 : index
    %c0_51 = arith.constant 0 : index
    %c12 = arith.constant 12 : index
    %c0_52 = arith.constant 0 : index
    %38 = vector.load %arg1[%c0_50, %c0_51, %c12, %c0_52] : memref<1x4x16x16xf32, #tpu.memory_space<vmem>>, vector<1x4x1x16xf32>
    %39 = vector.shape_cast %38 : vector<1x4x1x16xf32> to vector<4x16xf32>
    %c0_53 = arith.constant 0 : index
    %c235 = arith.constant 235 : index
    %40 = vector.load %arg4[%c0_53, %c235] : memref<4x512xf32, #tpu.memory_space<vmem>>, vector<4x16xf32>
    tpu.vector_store %arg4[%c0_53, %c235], %39 {strides = array<i32>} : memref<4x512xf32, #tpu.memory_space<vmem>>, vector<4x16xf32>,
    %c0_54 = arith.constant 0 : index
    %c0_55 = arith.constant 0 : index
    %c13 = arith.constant 13 : index
    %c0_56 = arith.constant 0 : index
    %41 = vector.load %arg1[%c0_54, %c0_55, %c13, %c0_56] : memref<1x4x16x16xf32, #tpu.memory_space<vmem>>, vector<1x4x1x16xf32>
    %42 = vector.shape_cast %41 : vector<1x4x1x16xf32> to vector<4x16xf32>
    %c0_57 = arith.constant 0 : index
    %c253 = arith.constant 253 : index
    %43 = vector.load %arg4[%c0_57, %c253] : memref<4x512xf32, #tpu.memory_space<vmem>>, vector<4x16xf32>
    tpu.vector_store %arg4[%c0_57, %c253], %42 {strides = array<i32>} : memref<4x512xf32, #tpu.memory_space<vmem>>, vector<4x16xf32>,
    %c0_58 = arith.constant 0 : index
    %c0_59 = arith.constant 0 : index
    %c14 = arith.constant 14 : index
    %c0_60 = arith.constant 0 : index
    %44 = vector.load %arg1[%c0_58, %c0_59, %c14, %c0_60] : memref<1x4x16x16xf32, #tpu.memory_space<vmem>>, vector<1x4x1x16xf32>
    %45 = vector.shape_cast %44 : vector<1x4x1x16xf32> to vector<4x16xf32>
    %c0_61 = arith.constant 0 : index
    %c271 = arith.constant 271 : index
    %46 = vector.load %arg4[%c0_61, %c271] : memref<4x512xf32, #tpu.memory_space<vmem>>, vector<4x16xf32>
    tpu.vector_store %arg4[%c0_61, %c271], %45 {strides = array<i32>} : memref<4x512xf32, #tpu.memory_space<vmem>>, vector<4x16xf32>,
    %c0_62 = arith.constant 0 : index
    %c0_63 = arith.constant 0 : index
    %c15 = arith.constant 15 : index
    %c0_64 = arith.constant 0 : index
    %47 = vector.load %arg1[%c0_62, %c0_63, %c15, %c0_64] : memref<1x4x16x16xf32, #tpu.memory_space<vmem>>, vector<1x4x1x16xf32>
    %48 = vector.shape_cast %47 : vector<1x4x1x16xf32> to vector<4x16xf32>
    %c0_65 = arith.constant 0 : index
    %c289 = arith.constant 289 : index
    %49 = vector.load %arg4[%c0_65, %c289] : memref<4x512xf32, #tpu.memory_space<vmem>>, vector<4x16xf32>
    tpu.vector_store %arg4[%c0_65, %c289], %48 {strides = array<i32>} : memref<4x512xf32, #tpu.memory_space<vmem>>, vector<4x16xf32>,
    %c0_66 = arith.constant 0 : index
    %c0_67 = arith.constant 0 : index
    %50 = vector.load %arg4[%c0_66, %c0_67] : memref<4x512xf32, #tpu.memory_space<vmem>>, vector<4x384xf32>
    %c0_68 = arith.constant 0 : index
    %c0_69 = arith.constant 0 : index
    %51 = vector.load %arg5[%c0_68, %c0_69] : memref<36x384xf32, #tpu.memory_space<vmem>>, vector<4x384xf32>
    tpu.vector_store %arg5[%c0_68, %c0_69], %50 {strides = array<i32>} : memref<36x384xf32, #tpu.memory_space<vmem>>, vector<4x384xf32>,
    %c0_70 = arith.constant 0 : index
    %c1_71 = arith.constant 1 : index
    %52 = vector.load %arg4[%c0_70, %c1_71] : memref<4x512xf32, #tpu.memory_space<vmem>>, vector<4x384xf32>
    %c4_72 = arith.constant 4 : index
    %c0_73 = arith.constant 0 : index
    %53 = vector.load %arg5[%c4_72, %c0_73] : memref<36x384xf32, #tpu.memory_space<vmem>>, vector<4x384xf32>
    tpu.vector_store %arg5[%c4_72, %c0_73], %52 {strides = array<i32>} : memref<36x384xf32, #tpu.memory_space<vmem>>, vector<4x384xf32>,
    %c0_74 = arith.constant 0 : index
    %c2_75 = arith.constant 2 : index
    %54 = vector.load %arg4[%c0_74, %c2_75] : memref<4x512xf32, #tpu.memory_space<vmem>>, vector<4x384xf32>
    %c8_76 = arith.constant 8 : index
    %c0_77 = arith.constant 0 : index
    %55 = vector.load %arg5[%c8_76, %c0_77] : memref<36x384xf32, #tpu.memory_space<vmem>>, vector<4x384xf32>
    tpu.vector_store %arg5[%c8_76, %c0_77], %54 {strides = array<i32>} : memref<36x384xf32, #tpu.memory_space<vmem>>, vector<4x384xf32>,
    %c0_78 = arith.constant 0 : index
    %c18 = arith.constant 18 : index
    %56 = vector.load %arg4[%c0_78, %c18] : memref<4x512xf32, #tpu.memory_space<vmem>>, vector<4x384xf32>
    %c12_79 = arith.constant 12 : index
    %c0_80 = arith.constant 0 : index
    %57 = vector.load %arg5[%c12_79, %c0_80] : memref<36x384xf32, #tpu.memory_space<vmem>>, vector<4x384xf32>
    tpu.vector_store %arg5[%c12_79, %c0_80], %56 {strides = array<i32>} : memref<36x384xf32, #tpu.memory_space<vmem>>, vector<4x384xf32>,
    %c0_81 = arith.constant 0 : index
    %c19_82 = arith.constant 19 : index
    %58 = vector.load %arg4[%c0_81, %c19_82] : memref<4x512xf32, #tpu.memory_space<vmem>>, vector<4x384xf32>
    %c16 = arith.constant 16 : index
    %c0_83 = arith.constant 0 : index
    %59 = vector.load %arg5[%c16, %c0_83] : memref<36x384xf32, #tpu.memory_space<vmem>>, vector<4x384xf32>
    tpu.vector_store %arg5[%c16, %c0_83], %58 {strides = array<i32>} : memref<36x384xf32, #tpu.memory_space<vmem>>, vector<4x384xf32>,
    %c0_84 = arith.constant 0 : index
    %c20 = arith.constant 20 : index
    %60 = vector.load %arg4[%c0_84, %c20] : memref<4x512xf32, #tpu.memory_space<vmem>>, vector<4x384xf32>
    %c20_85 = arith.constant 20 : index
    %c0_86 = arith.constant 0 : index
    %61 = vector.load %arg5[%c20_85, %c0_86] : memref<36x384xf32, #tpu.memory_space<vmem>>, vector<4x384xf32>
    tpu.vector_store %arg5[%c20_85, %c0_86], %60 {strides = array<i32>} : memref<36x384xf32, #tpu.memory_space<vmem>>, vector<4x384xf32>,
    %c0_87 = arith.constant 0 : index
    %c36 = arith.constant 36 : index
    %62 = vector.load %arg4[%c0_87, %c36] : memref<4x512xf32, #tpu.memory_space<vmem>>, vector<4x384xf32>
    %c24 = arith.constant 24 : index
    %c0_88 = arith.constant 0 : index
    %63 = vector.load %arg5[%c24, %c0_88] : memref<36x384xf32, #tpu.memory_space<vmem>>, vector<4x384xf32>
    tpu.vector_store %arg5[%c24, %c0_88], %62 {strides = array<i32>} : memref<36x384xf32, #tpu.memory_space<vmem>>, vector<4x384xf32>,
    %c0_89 = arith.constant 0 : index
    %c37_90 = arith.constant 37 : index
    %64 = vector.load %arg4[%c0_89, %c37_90] : memref<4x512xf32, #tpu.memory_space<vmem>>, vector<4x384xf32>
    %c28 = arith.constant 28 : index
    %c0_91 = arith.constant 0 : index
    %65 = vector.load %arg5[%c28, %c0_91] : memref<36x384xf32, #tpu.memory_space<vmem>>, vector<4x384xf32>
    tpu.vector_store %arg5[%c28, %c0_91], %64 {strides = array<i32>} : memref<36x384xf32, #tpu.memory_space<vmem>>, vector<4x384xf32>,
    %c0_92 = arith.constant 0 : index
    %c38 = arith.constant 38 : index
    %66 = vector.load %arg4[%c0_92, %c38] : memref<4x512xf32, #tpu.memory_space<vmem>>, vector<4x384xf32>
    %c32 = arith.constant 32 : index
    %c0_93 = arith.constant 0 : index
    %67 = vector.load %arg5[%c32, %c0_93] : memref<36x384xf32, #tpu.memory_space<vmem>>, vector<4x384xf32>
    tpu.vector_store %arg5[%c32, %c0_93], %66 {strides = array<i32>} : memref<36x384xf32, #tpu.memory_space<vmem>>, vector<4x384xf32>,
    %c0_94 = arith.constant 0 : index
    %c0_95 = arith.constant 0 : index
    %68 = vector.load %arg2[%c0_94, %c0_95] : memref<8x36xf32, #tpu.memory_space<vmem>>, vector<8x36xf32>
    %c0_96 = arith.constant 0 : index
    %c0_97 = arith.constant 0 : index
    %69 = vector.load %arg5[%c0_96, %c0_97] : memref<36x384xf32, #tpu.memory_space<vmem>>, vector<36x384xf32>
    %cst_98 = arith.constant dense<0.000000e+00> : vector<8x384xf32>
    %70 = tpu.matmul %68, %69, %cst_98 {dimension_numbers = #tpu.dot_dimension_numbers<[1], [0], [0], [1], [0, 0, 1, 1], [], []>} : vector<8x36xf32>, vector<36x384xf32>, vector<8x384xf32> -> vector<8x384xf32>
    %71 = vector.extract_strided_slice %70 {offsets = [0, 0], sizes = [8, 16], strides = [1, 1]} : vector<8x384xf32> to vector<8x16xf32>
    %c0_99 = arith.constant 0 : index
    %c0_100 = arith.constant 0 : index
    %c0_101 = arith.constant 0 : index
    %72 = vector.load %arg3[%c0_99, %c0_100, %c0_101] : memref<1x8x256xf32, #tpu.memory_space<vmem>>, vector<1x8x16xf32>
    %73 = vector.shape_cast %72 : vector<1x8x16xf32> to vector<8x16xf32>
    %74 = vector.shape_cast %71 : vector<8x16xf32> to vector<1x8x16xf32>
    tpu.vector_store %arg3[%c0_99, %c0_100, %c0_101], %74 {strides = array<i32>} : memref<1x8x256xf32, #tpu.memory_space<vmem>>, vector<1x8x16xf32>,
    %75 = vector.extract_strided_slice %70 {offsets = [0, 18], sizes = [8, 16], strides = [1, 1]} : vector<8x384xf32> to vector<8x16xf32>
    %c0_102 = arith.constant 0 : index
    %c0_103 = arith.constant 0 : index
    %c16_104 = arith.constant 16 : index
    %76 = vector.load %arg3[%c0_102, %c0_103, %c16_104] : memref<1x8x256xf32, #tpu.memory_space<vmem>>, vector<1x8x16xf32>
    %77 = vector.shape_cast %76 : vector<1x8x16xf32> to vector<8x16xf32>
    %78 = vector.shape_cast %75 : vector<8x16xf32> to vector<1x8x16xf32>
    tpu.vector_store %arg3[%c0_102, %c0_103, %c16_104], %78 {strides = array<i32>} : memref<1x8x256xf32, #tpu.memory_space<vmem>>, vector<1x8x16xf32>,
    %79 = vector.extract_strided_slice %70 {offsets = [0, 36], sizes = [8, 16], strides = [1, 1]} : vector<8x384xf32> to vector<8x16xf32>
    %c0_105 = arith.constant 0 : index
    %c0_106 = arith.constant 0 : index
    %c32_107 = arith.constant 32 : index
    %80 = vector.load %arg3[%c0_105, %c0_106, %c32_107] : memref<1x8x256xf32, #tpu.memory_space<vmem>>, vector<1x8x16xf32>
    %81 = vector.shape_cast %80 : vector<1x8x16xf32> to vector<8x16xf32>
    %82 = vector.shape_cast %79 : vector<8x16xf32> to vector<1x8x16xf32>
    tpu.vector_store %arg3[%c0_105, %c0_106, %c32_107], %82 {strides = array<i32>} : memref<1x8x256xf32, #tpu.memory_space<vmem>>, vector<1x8x16xf32>,
    %83 = vector.extract_strided_slice %70 {offsets = [0, 54], sizes = [8, 16], strides = [1, 1]} : vector<8x384xf32> to vector<8x16xf32>
    %c0_108 = arith.constant 0 : index
    %c0_109 = arith.constant 0 : index
    %c48 = arith.constant 48 : index
    %84 = vector.load %arg3[%c0_108, %c0_109, %c48] : memref<1x8x256xf32, #tpu.memory_space<vmem>>, vector<1x8x16xf32>
    %85 = vector.shape_cast %84 : vector<1x8x16xf32> to vector<8x16xf32>
    %86 = vector.shape_cast %83 : vector<8x16xf32> to vector<1x8x16xf32>
    tpu.vector_store %arg3[%c0_108, %c0_109, %c48], %86 {strides = array<i32>} : memref<1x8x256xf32, #tpu.memory_space<vmem>>, vector<1x8x16xf32>,
    %87 = vector.extract_strided_slice %70 {offsets = [0, 72], sizes = [8, 16], strides = [1, 1]} : vector<8x384xf32> to vector<8x16xf32>
    %c0_110 = arith.constant 0 : index
    %c0_111 = arith.constant 0 : index
    %c64 = arith.constant 64 : index
    %88 = vector.load %arg3[%c0_110, %c0_111, %c64] : memref<1x8x256xf32, #tpu.memory_space<vmem>>, vector<1x8x16xf32>
    %89 = vector.shape_cast %88 : vector<1x8x16xf32> to vector<8x16xf32>
    %90 = vector.shape_cast %87 : vector<8x16xf32> to vector<1x8x16xf32>
    tpu.vector_store %arg3[%c0_110, %c0_111, %c64], %90 {strides = array<i32>} : memref<1x8x256xf32, #tpu.memory_space<vmem>>, vector<1x8x16xf32>,
    %91 = vector.extract_strided_slice %70 {offsets = [0, 90], sizes = [8, 16], strides = [1, 1]} : vector<8x384xf32> to vector<8x16xf32>
    %c0_112 = arith.constant 0 : index
    %c0_113 = arith.constant 0 : index
    %c80 = arith.constant 80 : index
    %92 = vector.load %arg3[%c0_112, %c0_113, %c80] : memref<1x8x256xf32, #tpu.memory_space<vmem>>, vector<1x8x16xf32>
    %93 = vector.shape_cast %92 : vector<1x8x16xf32> to vector<8x16xf32>
    %94 = vector.shape_cast %91 : vector<8x16xf32> to vector<1x8x16xf32>
    tpu.vector_store %arg3[%c0_112, %c0_113, %c80], %94 {strides = array<i32>} : memref<1x8x256xf32, #tpu.memory_space<vmem>>, vector<1x8x16xf32>,
    %95 = vector.extract_strided_slice %70 {offsets = [0, 108], sizes = [8, 16], strides = [1, 1]} : vector<8x384xf32> to vector<8x16xf32>
    %c0_114 = arith.constant 0 : index
    %c0_115 = arith.constant 0 : index
    %c96 = arith.constant 96 : index
    %96 = vector.load %arg3[%c0_114, %c0_115, %c96] : memref<1x8x256xf32, #tpu.memory_space<vmem>>, vector<1x8x16xf32>
    %97 = vector.shape_cast %96 : vector<1x8x16xf32> to vector<8x16xf32>
    %98 = vector.shape_cast %95 : vector<8x16xf32> to vector<1x8x16xf32>
    tpu.vector_store %arg3[%c0_114, %c0_115, %c96], %98 {strides = array<i32>} : memref<1x8x256xf32, #tpu.memory_space<vmem>>, vector<1x8x16xf32>,
    %99 = vector.extract_strided_slice %70 {offsets = [0, 126], sizes = [8, 16], strides = [1, 1]} : vector<8x384xf32> to vector<8x16xf32>
    %c0_116 = arith.constant 0 : index
    %c0_117 = arith.constant 0 : index
    %c112 = arith.constant 112 : index
    %100 = vector.load %arg3[%c0_116, %c0_117, %c112] : memref<1x8x256xf32, #tpu.memory_space<vmem>>, vector<1x8x16xf32>
    %101 = vector.shape_cast %100 : vector<1x8x16xf32> to vector<8x16xf32>
    %102 = vector.shape_cast %99 : vector<8x16xf32> to vector<1x8x16xf32>
    tpu.vector_store %arg3[%c0_116, %c0_117, %c112], %102 {strides = array<i32>} : memref<1x8x256xf32, #tpu.memory_space<vmem>>, vector<1x8x16xf32>,
    %103 = vector.extract_strided_slice %70 {offsets = [0, 144], sizes = [8, 16], strides = [1, 1]} : vector<8x384xf32> to vector<8x16xf32>
    %c0_118 = arith.constant 0 : index
    %c0_119 = arith.constant 0 : index
    %c128 = arith.constant 128 : index
    %104 = vector.load %arg3[%c0_118, %c0_119, %c128] : memref<1x8x256xf32, #tpu.memory_space<vmem>>, vector<1x8x16xf32>
    %105 = vector.shape_cast %104 : vector<1x8x16xf32> to vector<8x16xf32>
    %106 = vector.shape_cast %103 : vector<8x16xf32> to vector<1x8x16xf32>
    tpu.vector_store %arg3[%c0_118, %c0_119, %c128], %106 {strides = array<i32>} : memref<1x8x256xf32, #tpu.memory_space<vmem>>, vector<1x8x16xf32>,
    %107 = vector.extract_strided_slice %70 {offsets = [0, 162], sizes = [8, 16], strides = [1, 1]} : vector<8x384xf32> to vector<8x16xf32>
    %c0_120 = arith.constant 0 : index
    %c0_121 = arith.constant 0 : index
    %c144 = arith.constant 144 : index
    %108 = vector.load %arg3[%c0_120, %c0_121, %c144] : memref<1x8x256xf32, #tpu.memory_space<vmem>>, vector<1x8x16xf32>
    %109 = vector.shape_cast %108 : vector<1x8x16xf32> to vector<8x16xf32>
    %110 = vector.shape_cast %107 : vector<8x16xf32> to vector<1x8x16xf32>
    tpu.vector_store %arg3[%c0_120, %c0_121, %c144], %110 {strides = array<i32>} : memref<1x8x256xf32, #tpu.memory_space<vmem>>, vector<1x8x16xf32>,
    %111 = vector.extract_strided_slice %70 {offsets = [0, 180], sizes = [8, 16], strides = [1, 1]} : vector<8x384xf32> to vector<8x16xf32>
    %c0_122 = arith.constant 0 : index
    %c0_123 = arith.constant 0 : index
    %c160 = arith.constant 160 : index
    %112 = vector.load %arg3[%c0_122, %c0_123, %c160] : memref<1x8x256xf32, #tpu.memory_space<vmem>>, vector<1x8x16xf32>
    %113 = vector.shape_cast %112 : vector<1x8x16xf32> to vector<8x16xf32>
    %114 = vector.shape_cast %111 : vector<8x16xf32> to vector<1x8x16xf32>
    tpu.vector_store %arg3[%c0_122, %c0_123, %c160], %114 {strides = array<i32>} : memref<1x8x256xf32, #tpu.memory_space<vmem>>, vector<1x8x16xf32>,
    %115 = vector.extract_strided_slice %70 {offsets = [0, 198], sizes = [8, 16], strides = [1, 1]} : vector<8x384xf32> to vector<8x16xf32>
    %c0_124 = arith.constant 0 : index
    %c0_125 = arith.constant 0 : index
    %c176 = arith.constant 176 : index
    %116 = vector.load %arg3[%c0_124, %c0_125, %c176] : memref<1x8x256xf32, #tpu.memory_space<vmem>>, vector<1x8x16xf32>
    %117 = vector.shape_cast %116 : vector<1x8x16xf32> to vector<8x16xf32>
    %118 = vector.shape_cast %115 : vector<8x16xf32> to vector<1x8x16xf32>
    tpu.vector_store %arg3[%c0_124, %c0_125, %c176], %118 {strides = array<i32>} : memref<1x8x256xf32, #tpu.memory_space<vmem>>, vector<1x8x16xf32>,
    %119 = vector.extract_strided_slice %70 {offsets = [0, 216], sizes = [8, 16], strides = [1, 1]} : vector<8x384xf32> to vector<8x16xf32>
    %c0_126 = arith.constant 0 : index
    %c0_127 = arith.constant 0 : index
    %c192 = arith.constant 192 : index
    %120 = vector.load %arg3[%c0_126, %c0_127, %c192] : memref<1x8x256xf32, #tpu.memory_space<vmem>>, vector<1x8x16xf32>
    %121 = vector.shape_cast %120 : vector<1x8x16xf32> to vector<8x16xf32>
    %122 = vector.shape_cast %119 : vector<8x16xf32> to vector<1x8x16xf32>
    tpu.vector_store %arg3[%c0_126, %c0_127, %c192], %122 {strides = array<i32>} : memref<1x8x256xf32, #tpu.memory_space<vmem>>, vector<1x8x16xf32>,
    %123 = vector.extract_strided_slice %70 {offsets = [0, 234], sizes = [8, 16], strides = [1, 1]} : vector<8x384xf32> to vector<8x16xf32>
    %c0_128 = arith.constant 0 : index
    %c0_129 = arith.constant 0 : index
    %c208 = arith.constant 208 : index
    %124 = vector.load %arg3[%c0_128, %c0_129, %c208] : memref<1x8x256xf32, #tpu.memory_space<vmem>>, vector<1x8x16xf32>
    %125 = vector.shape_cast %124 : vector<1x8x16xf32> to vector<8x16xf32>
    %126 = vector.shape_cast %123 : vector<8x16xf32> to vector<1x8x16xf32>
    tpu.vector_store %arg3[%c0_128, %c0_129, %c208], %126 {strides = array<i32>} : memref<1x8x256xf32, #tpu.memory_space<vmem>>, vector<1x8x16xf32>,
    %127 = vector.extract_strided_slice %70 {offsets = [0, 252], sizes = [8, 16], strides = [1, 1]} : vector<8x384xf32> to vector<8x16xf32>
    %c0_130 = arith.constant 0 : index
    %c0_131 = arith.constant 0 : index
    %c224 = arith.constant 224 : index
    %128 = vector.load %arg3[%c0_130, %c0_131, %c224] : memref<1x8x256xf32, #tpu.memory_space<vmem>>, vector<1x8x16xf32>
    %129 = vector.shape_cast %128 : vector<1x8x16xf32> to vector<8x16xf32>
    %130 = vector.shape_cast %127 : vector<8x16xf32> to vector<1x8x16xf32>
    tpu.vector_store %arg3[%c0_130, %c0_131, %c224], %130 {strides = array<i32>} : memref<1x8x256xf32, #tpu.memory_space<vmem>>, vector<1x8x16xf32>,
    %131 = vector.extract_strided_slice %70 {offsets = [0, 270], sizes = [8, 16], strides = [1, 1]} : vector<8x384xf32> to vector<8x16xf32>
    %c0_132 = arith.constant 0 : index
    %c0_133 = arith.constant 0 : index
    %c240 = arith.constant 240 : index
    %132 = vector.load %arg3[%c0_132, %c0_133, %c240] : memref<1x8x256xf32, #tpu.memory_space<vmem>>, vector<1x8x16xf32>
    %133 = vector.shape_cast %132 : vector<1x8x16xf32> to vector<8x16xf32>
    %134 = vector.shape_cast %131 : vector<8x16xf32> to vector<1x8x16xf32>
    tpu.vector_store %arg3[%c0_132, %c0_133, %c240], %134 {strides = array<i32>} : memref<1x8x256xf32, #tpu.memory_space<vmem>>, vector<1x8x16xf32>,
    return
  }
  func.func @transform_0(%arg0: i32) -> (i32, i32, i32, i32) {
    %c0_i32 = arith.constant 0 : i32
    %c0_i32_0 = arith.constant 0 : i32
    %c0_i32_1 = arith.constant 0 : i32
    %c0_i32_2 = arith.constant 0 : i32
    return %arg0, %c0_i32, %c0_i32_0, %c0_i32_1 : i32, i32, i32, i32
  }
  func.func @transform_1(%arg0: i32) -> (i32, i32) {
    %c0_i32 = arith.constant 0 : i32
    %c0_i32_0 = arith.constant 0 : i32
    %c0_i32_1 = arith.constant 0 : i32
    return %c0_i32, %c0_i32_0 : i32, i32
  }
  func.func @transform_2(%arg0: i32) -> (i32, i32, i32) {
    %c0_i32 = arith.constant 0 : i32
    %c0_i32_0 = arith.constant 0 : i32
    %c0_i32_1 = arith.constant 0 : i32
    return %arg0, %c0_i32, %c0_i32_0 : i32, i32, i32
  }
}

</mosaic_0001>

<llo_original>
// kernel: tpu_custom_call.1
$region0: #{tpu_custom_call.1}
  #allocation0 [shape = 'u32[]', space=smem, size = 0x4, offset = 0x4, fixed_abs, tag = 'smem constant byte address 0x4 - core index']
  #allocation1 [shape = 'u32[72,128]{1,0:T(1,128)}', space=vmem, size = 0x9000, scoped, tag = 'internal scratch']
  #allocation2 [shape = 'f32[4,512]{1,0:T(4,128)}', space=vmem, size = 0x2000, scoped, tag = 'scratch operand']
  #allocation3 [shape = 'f32[36,384]{1,0:T(8,128)}', space=vmem, size = 0xf000, scoped, tag = 'scratch operand']
  %s0 = inlined_call_operand.hbm [shape: f32[2,4,16,16], index: 0, kind: input, shape index: {}]
  %s1 = inlined_call_operand.hbm [shape: f32[8,36], index: 1, kind: input, shape index: {}]
  %s2 = inlined_call_operand.hbm [shape: f32[2,8,256], index: 2, kind: output, shape index: {}]
  %s3 = sld [smem:[#allocation0]]
  $region49: #{tpu_custom_call.1} parent=0
    _
  %s5 = ssub.s32 1, %s3
  %s6 = scalar_select 0, %s5, %s3
  $region1: #{tpu_custom_call.1} parent=0
    #allocation4 [shape = 'u8[65536]{0}', space=vmem, size = 0x10000, scoped, tag = 'input window, operand 0']
    #allocation5 [shape = 's32[2]{0}', space=sflag, size = 0x8, scoped, tag = 'scoped memory for tpu_custom_call.1']
    #allocation6 [shape = 's32[2]{0}', space=sflag, size = 0x8, scoped, tag = 'scoped memory for tpu_custom_call.1']
    #allocation7 [shape = 'u8[4096]{0}', space=vmem, size = 0x1000, scoped, tag = 'input window, operand 1, single buffered']
    #allocation8 [shape = 's32[1]{0}', space=sflag, size = 0x4, scoped, tag = 'scoped memory for tpu_custom_call.1']
    #allocation9 [shape = 'u8[16384]{0}', space=vmem, size = 0x4000, scoped, tag = 'output window, operand 0']
    %7 = vsyncpa [#allocation5], 0
    %s8 = scalar_lea.sflag [#allocation5], 1
    %9 = vsyncpa %s8, 0
    %10 = vsyncpa [#allocation8], 0
    %11 = vsyncpa [#allocation6], 0
    %s12 = scalar_lea.sflag [#allocation6], 1
    %13 = vsyncpa %s12, 0
    loop: start=0, step=1, limit=4
    $region2: #{tpu_custom_call.1} parent=1 // loop_pre_header
      _
    $region3: #{tpu_custom_call.1} parent=1 // loop_header
      %s15 = sphi 0, %s19
      %p16 = scmp.ge.s32.totalorder %s15, 4
      %s25 = sphi 0, %s27
      %s28 = sphi 0, %s25
      %s29 = sphi 0, %s28
      %s45 = sphi 0, %s29
      %s49 = sphi 0, %s49
      %s51 = sphi 0, %s49
      %s52 = sphi 0, %s51
      %s66 = sphi 0, %s52
      %s72 = sphi 0, %s74
      %s75 = sphi 0, %s72
      %s76 = sphi 0, %s75
      %s92 = sphi 0, %s76
    $region4: #{tpu_custom_call.1} parent=1 // loop_header_branch
      %18 = sbr.rel (%p16) target = $region8
    $region5: #{tpu_custom_call.1} parent=1 // loop_body
      %s20 = ssub.s32 %s15, 1
      %s21 = ssub.s32 %s15, 2
      %s22 = sadd.s32 %s15, 1
      %s23 = ssub.s32 %s15, %s22
      %p24 = scmp.eq.s32.totalorder %s23, 0
      %s26 = sadd.s32 %s25, 1
      %s27 = scalar_select %p24, %s25, %s26
      %p30 = pneg %p24
      %p31 = scmp.eq.s32.totalorder %s15, 1
      %p32 = por %p30, %p31
      %p33 = scmp.ne.s32.totalorder %s25, %s28
      %p34 = scmp.eq.s32.totalorder %s15, 0
      %p35 = por %p33, %p34
      %p36 = scmp.ne.s32.totalorder %s25, %s28
      %p37 = scmp.eq.s32.totalorder %s20, 1
      %p38 = por %p36, %p37
      %p39 = scmp.ne.s32.totalorder %s28, %s29
      %p40 = scmp.eq.s32.totalorder %s20, 0
      %p41 = por %p39, %p40
      %p42 = scmp.ne.s32.totalorder %s28, %s29
      %p43 = scmp.eq.s32.totalorder %s21, 1
      %p44 = por %p42, %p43
      %p46 = scmp.ne.s32.totalorder %s29, %s45
      %p47 = scmp.eq.s32.totalorder %s21, 0
      %p48 = por %p46, %p47
      %s50 = sadd.s32 %s49, 1
      %p53 = scmp.eq.s32.totalorder %s15, 1
      %p54 = scmp.ne.s32.totalorder %s49, %s51
      %p55 = scmp.eq.s32.totalorder %s15, 0
      %p56 = por %p54, %p55
      %p57 = scmp.ne.s32.totalorder %s49, %s51
      %p58 = scmp.eq.s32.totalorder %s20, 1
      %p59 = por %p57, %p58
      %p60 = scmp.ne.s32.totalorder %s51, %s52
      %p61 = scmp.eq.s32.totalorder %s20, 0
      %p62 = por %p60, %p61
      %p63 = scmp.ne.s32.totalorder %s51, %s52
      %p64 = scmp.eq.s32.totalorder %s21, 1
      %p65 = por %p63, %p64
      %p67 = scmp.ne.s32.totalorder %s52, %s66
      %p68 = scmp.eq.s32.totalorder %s21, 0
      %p69 = por %p67, %p68
      %s70 = ssub.s32 %s15, %s22
      %p71 = scmp.eq.s32.totalorder %s70, 0
      %s73 = sadd.s32 %s72, 1
      %s74 = scalar_select %p71, %s72, %s73
      %p77 = pneg %p71
      %p78 = scmp.eq.s32.totalorder %s15, 1
      %p79 = por %p77, %p78
      %p80 = scmp.ne.s32.totalorder %s72, %s75
      %p81 = scmp.eq.s32.totalorder %s15, 0
      %p82 = por %p80, %p81
      %p83 = scmp.ne.s32.totalorder %s72, %s75
      %p84 = scmp.eq.s32.totalorder %s20, 1
      %p85 = por %p83, %p84
      %p86 = scmp.ne.s32.totalorder %s75, %s76
      %p87 = scmp.eq.s32.totalorder %s20, 0
      %p88 = por %p86, %p87
      %p89 = scmp.ne.s32.totalorder %s75, %s76
      %p90 = scmp.eq.s32.totalorder %s21, 1
      %p91 = por %p89, %p90
      %p93 = scmp.ne.s32.totalorder %s76, %s92
      %p94 = scmp.eq.s32.totalorder %s21, 0
      %p95 = por %p93, %p94
      %p96 = scmp.le.s32.totalorder 1, %s15
      %p97 = scmp.lt.s32.totalorder %s15, 3
      %p98 = pnand %p96, %p97
      %p99 = pneg %p98
      // Predicated region
      $region9: #{tpu_custom_call.1} parent=5 // pred_check
        _
      $region10: #{tpu_custom_call.1} parent=5 // pred_check_branch
        %101 = sbr.rel (%p98) target = $region12
      $region11: #{tpu_custom_call.1} parent=5 // pred_region
        %s102 = ssub.s32 %s15, 1
        // Predicated region
        $region13: #{tpu_custom_call.1} parent=11 // pred_check
          %p103 = pneg %p62
        $region14: #{tpu_custom_call.1} parent=11 // pred_check_branch
          %105 = sbr.rel (%p103) target = $region16
        $region15: #{tpu_custom_call.1} parent=11 // pred_region
          %107 = vsyncadd [#allocation8], 0
          %s109 = sshll.u32 %s1, 4
          %s110 = int_to_ptr.hbm [resolvable:$true] %s109
          %s111 = sshll.u32 [#allocation7], 4
          %s112 = int_to_ptr.vmem [resolvable:$true] %s111
          %114 = dma.hbm_to_vmem [thread:$0]  %s110, 128, %s112, [#allocation8]
        $region16: #{tpu_custom_call.1} parent=11 // pred_fallthru
          _
      $region12: #{tpu_custom_call.1} parent=5 // pred_fallthru
        _
      %p115 = scmp.lt.s32.totalorder %s15, 2
      // Predicated region
      $region17: #{tpu_custom_call.1} parent=5 // pred_check
        %p116 = pneg %p115
      $region18: #{tpu_custom_call.1} parent=5 // pred_check_branch
        %118 = sbr.rel (%p116) target = $region20
      $region19: #{tpu_custom_call.1} parent=5 // pred_region
        // Predicated region
        $region21: #{tpu_custom_call.1} parent=19 // pred_check
          %p119 = pneg %p35
        $region22: #{tpu_custom_call.1} parent=19 // pred_check_branch
          %121 = sbr.rel (%p119) target = $region24
        $region23: #{tpu_custom_call.1} parent=19 // pred_region
          %s122 = sand.u32 %s25, 1
          %s123 = scalar_lea.sflag [#allocation5], %s122
          %s124 = sand.u32 %s25, 1
          %s125 = smul.addr %s124, 64
          %s126 = scalar_lea.vmem [#allocation4], %s125
          %128 = vsyncadd %s123, 0
          %s129 = smul.addr %s15, 8
          %s130 = smul.addr %s129, 8
          %s131 = scalar_lea.hbm %s0, %s130
          %s132 = sshll.u32 %s131, 4
          %s133 = int_to_ptr.hbm [resolvable:$true] %s132
          %s134 = sshll.u32 %s126, 4
          %s135 = int_to_ptr.vmem [resolvable:$true] %s134
          %140 = dma.hbm_to_vmem [thread:$0]  %s133, 1024, %s135, %s123, 128, 128, 8
        $region24: #{tpu_custom_call.1} parent=19 // pred_fallthru
          _
      $region20: #{tpu_custom_call.1} parent=5 // pred_fallthru
        _
      %p141 = scmp.le.s32.totalorder 1, %s15
      %p142 = scmp.lt.s32.totalorder %s15, 3
      %p143 = pnand %p141, %p142
      %p144 = pneg %p143
      // Predicated region
      $region25: #{tpu_custom_call.1} parent=5 // pred_check
        _
      $region26: #{tpu_custom_call.1} parent=5 // pred_check_branch
        %146 = sbr.rel (%p143) target = $region28
      $region27: #{tpu_custom_call.1} parent=5 // pred_region
        %s147 = ssub.s32 %s15, 1
        %s148 = sand.u32 %s28, 1
        %s149 = scalar_lea.sflag [#allocation5], %s148
        %s150 = sand.u32 %s28, 1
        %s151 = smul.addr %s150, 64
        %s152 = scalar_lea.vmem [#allocation4], %s151
        // Predicated region
        $region29: #{tpu_custom_call.1} parent=27 // pred_check
          %p153 = pneg %p41
        $region30: #{tpu_custom_call.1} parent=27 // pred_check_branch
          %155 = sbr.rel (%p153) target = $region32
        $region31: #{tpu_custom_call.1} parent=27 // pred_region
          %157 = dma.done %s149, 1024
        $region32: #{tpu_custom_call.1} parent=27 // pred_fallthru
          _
        // Predicated region
        $region33: #{tpu_custom_call.1} parent=27 // pred_check
          %p158 = pneg %p62
        $region34: #{tpu_custom_call.1} parent=27 // pred_check_branch
          %160 = sbr.rel (%p158) target = $region36
        $region35: #{tpu_custom_call.1} parent=27 // pred_region
          %162 = dma.done [#allocation8], 128
        $region36: #{tpu_custom_call.1} parent=27 // pred_fallthru
          _
        %s163 = sand.u32 %s28, 1
        %s164 = scalar_lea.sflag [#allocation5], %s163
        %s165 = sand.u32 %s28, 1
        %s166 = smul.addr %s165, 64
        %s167 = scalar_lea.vmem [#allocation4], %s166
        %p168 = pneg %p41
        %p169 = pneg %p38
        %p170 = pneg %p62
        %p171 = pneg %p59
        %p172 = pneg %p88
        %p173 = pneg %p85
        %s174 = sand.u32 %s75, 1
        %s175 = scalar_lea.sflag [#allocation6], %s174
        %s176 = sand.u32 %s75, 1
        %s177 = smul.addr %s176, 16
        %s178 = scalar_lea.vmem [#allocation9], %s177
        %179 = vst [vmem:[#allocation2] sm:$0xff] 0.0
        %180 = vst [vmem:[#allocation2 + $0x8] sm:$0xff] 0.0
        %v181 = vld [vmem:[%s152] sm:$0x1]
        %v182 = vld [vmem:[%s152 + $0x10] sm:$0x1]
        %v183 = vld [vmem:[%s152 + $0x20] sm:$0x1]
        %v184 = vld [vmem:[%s152 + $0x30] sm:$0x1]
        %v189 = vrot.slane %v182, 7
        %vm190 = vcmask 1041409
        %v191 = vsel %vm190, %v189, %v181
        %vm192 = vcmask 1045509
        %v193 = vsel %vm192, %v189, %v191
        %v194 = vrot.slane %v183, 6
        %vm195 = vcmask 1042434
        %v196 = vsel %vm195, %v194, %v193
        %vm197 = vcmask 1046534
        %v198 = vsel %vm197, %v194, %v196
        %v199 = vrot.slane %v184, 5
        %vm200 = vcmask 1043459
        %v201 = vsel %vm200, %v199, %v198
        %vm202 = vcmask 1047559
        %v203 = vsel %vm202, %v199, %v201
        %204 = vrot.lane.b32.xlu0 %v203, 19
        %v205 = vpop.permute.xlu0 %204
        %vm207 = vcmask 281752
        %208 = vst.msk [vmem:[#allocation2] sm:$0xf] %vm207, %v205
        %v209 = vld [vmem:[%s152 + $0x1] sm:$0x1]
        %v210 = vld [vmem:[%s152 + $0x11] sm:$0x1]
        %v211 = vld [vmem:[%s152 + $0x21] sm:$0x1]
        %v212 = vld [vmem:[%s152 + $0x31] sm:$0x1]
        %v217 = vrot.slane %v210, 7
        %v218 = vsel %vm190, %v217, %v209
        %v219 = vsel %vm192, %v217, %v218
        %v220 = vrot.slane %v211, 6
        %v221 = vsel %vm195, %v220, %v219
        %v222 = vsel %vm197, %v220, %v221
        %v223 = vrot.slane %v212, 5
        %v224 = vsel %vm200, %v223, %v222
        %v225 = vsel %vm202, %v223, %v224
        %226 = vrot.lane.b32.xlu0 %v225, 37
        %v227 = vpop.permute.xlu0 %226
        %vm229 = vcmask 429352
        %230 = vst.msk [vmem:[#allocation2] sm:$0xf] %vm229, %v227
        %v231 = vld [vmem:[%s152 + $0x2] sm:$0x1]
        %v232 = vld [vmem:[%s152 + $0x12] sm:$0x1]
        %v233 = vld [vmem:[%s152 + $0x22] sm:$0x1]
        %v234 = vld [vmem:[%s152 + $0x32] sm:$0x1]
        %v239 = vrot.slane %v232, 7
        %v240 = vsel %vm190, %v239, %v231
        %v241 = vsel %vm192, %v239, %v240
        %v242 = vrot.slane %v233, 6
        %v243 = vsel %vm195, %v242, %v241
        %v244 = vsel %vm197, %v242, %v243
        %v245 = vrot.slane %v234, 5
        %v246 = vsel %vm200, %v245, %v244
        %v247 = vsel %vm202, %v245, %v246
        %248 = vrot.lane.b32.xlu0 %v247, 55
        %v249 = vpop.permute.xlu0 %248
        %vm251 = vcmask 576952
        %252 = vst.msk [vmem:[#allocation2] sm:$0xf] %vm251, %v249
        %v253 = vld [vmem:[%s152 + $0x3] sm:$0x1]
        %v254 = vld [vmem:[%s152 + $0x13] sm:$0x1]
        %v255 = vld [vmem:[%s152 + $0x23] sm:$0x1]
        %v256 = vld [vmem:[%s152 + $0x33] sm:$0x1]
        %v261 = vrot.slane %v254, 7
        %v262 = vsel %vm190, %v261, %v253
        %v263 = vsel %vm192, %v261, %v262
        %v264 = vrot.slane %v255, 6
        %v265 = vsel %vm195, %v264, %v263
        %v266 = vsel %vm197, %v264, %v265
        %v267 = vrot.slane %v256, 5
        %v268 = vsel %vm200, %v267, %v266
        %v269 = vsel %vm202, %v267, %v268
        %270 = vrot.lane.b32.xlu0 %v269, 73
        %v271 = vpop.permute.xlu0 %270
        %vm273 = vcmask 724552
        %274 = vst.msk [vmem:[#allocation2] sm:$0xf] %vm273, %v271
        %v275 = vld [vmem:[%s152 + $0x4] sm:$0x1]
        %v276 = vld [vmem:[%s152 + $0x14] sm:$0x1]
        %v277 = vld [vmem:[%s152 + $0x24] sm:$0x1]
        %v278 = vld [vmem:[%s152 + $0x34] sm:$0x1]
        %v283 = vrot.slane %v276, 7
        %v284 = vsel %vm190, %v283, %v275
        %v285 = vsel %vm192, %v283, %v284
        %v286 = vrot.slane %v277, 6
        %v287 = vsel %vm195, %v286, %v285
        %v288 = vsel %vm197, %v286, %v287
        %v289 = vrot.slane %v278, 5
        %v290 = vsel %vm200, %v289, %v288
        %v291 = vsel %vm202, %v289, %v290
        %292 = vrot.lane.b32.xlu0 %v291, 91
        %v293 = vpop.permute.xlu0 %292
        %vm295 = vcmask 872152
        %296 = vst.msk [vmem:[#allocation2] sm:$0xf] %vm295, %v293
        %v297 = vld [vmem:[%s152 + $0x5] sm:$0x1]
        %v298 = vld [vmem:[%s152 + $0x15] sm:$0x1]
        %v299 = vld [vmem:[%s152 + $0x25] sm:$0x1]
        %v300 = vld [vmem:[%s152 + $0x35] sm:$0x1]
        %v305 = vrot.slane %v298, 7
        %v306 = vsel %vm190, %v305, %v297
        %v307 = vsel %vm192, %v305, %v306
        %v308 = vrot.slane %v299, 6
        %v309 = vsel %vm195, %v308, %v307
        %v310 = vsel %vm197, %v308, %v309
        %v311 = vrot.slane %v300, 5
        %v312 = vsel %vm200, %v311, %v310
        %v313 = vsel %vm202, %v311, %v312
        %314 = vrot.lane.b32.xlu0 %v313, 109
        %v315 = vpop.permute.xlu0 %314
        %vm317 = vcmask 1019752
        %318 = vst.msk [vmem:[#allocation2] sm:$0xf] %vm317, %v315
        %v319 = vld [vmem:[%s152 + $0x6] sm:$0x1]
        %v320 = vld [vmem:[%s152 + $0x16] sm:$0x1]
        %v321 = vld [vmem:[%s152 + $0x26] sm:$0x1]
        %v322 = vld [vmem:[%s152 + $0x36] sm:$0x1]
        %v327 = vrot.slane %v320, 7
        %v328 = vsel %vm190, %v327, %v319
        %v329 = vsel %vm192, %v327, %v328
        %v330 = vrot.slane %v321, 6
        %v331 = vsel %vm195, %v330, %v329
        %v332 = vsel %vm197, %v330, %v331
        %v333 = vrot.slane %v322, 5
        %v334 = vsel %vm200, %v333, %v332
        %v335 = vsel %vm202, %v333, %v334
        %336 = vrot.lane.b32.xlu0 %v335, 127
        %v337 = vpop.permute.xlu0 %336
        %v338 = vrot.slane %v337, 4
        %vm339 = vcmask 1039360
        %v340 = vsel %vm339, %v338, %v337
        %vm342 = vcmask 1044472
        %vm343 = vcmask 121860
        %vm344 = vmor %vm343, %vm342
        %345 = vst.msk [vmem:[#allocation2] sm:$0xff] %vm344, %v340
        %v346 = vld [vmem:[%s152 + $0x7] sm:$0x1]
        %v347 = vld [vmem:[%s152 + $0x17] sm:$0x1]
        %v348 = vld [vmem:[%s152 + $0x27] sm:$0x1]
        %v349 = vld [vmem:[%s152 + $0x37] sm:$0x1]
        %v354 = vrot.slane %v347, 7
        %v355 = vsel %vm190, %v354, %v346
        %v356 = vsel %vm192, %v354, %v355
        %v357 = vrot.slane %v348, 6
        %v358 = vsel %vm195, %v357, %v356
        %v359 = vsel %vm197, %v357, %v358
        %v360 = vrot.slane %v349, 5
        %v361 = vsel %vm200, %v360, %v359
        %v362 = vsel %vm202, %v360, %v361
        %363 = vrot.lane.b32.xlu0 %v362, 17
        %v364 = vpop.permute.xlu0 %363
        %vm366 = vcmask 265352
        %367 = vst.msk [vmem:[#allocation2 + $0x4] sm:$0xf] %vm366, %v364
        %v368 = vld [vmem:[%s152 + $0x8] sm:$0x1]
        %v369 = vld [vmem:[%s152 + $0x18] sm:$0x1]
        %v370 = vld [vmem:[%s152 + $0x28] sm:$0x1]
        %v371 = vld [vmem:[%s152 + $0x38] sm:$0x1]
        %v376 = vrot.slane %v369, 7
        %v377 = vsel %vm190, %v376, %v368
        %v378 = vsel %vm192, %v376, %v377
        %v379 = vrot.slane %v370, 6
        %v380 = vsel %vm195, %v379, %v378
        %v381 = vsel %vm197, %v379, %v380
        %v382 = vrot.slane %v371, 5
        %v383 = vsel %vm200, %v382, %v381
        %v384 = vsel %vm202, %v382, %v383
        %385 = vrot.lane.b32.xlu0 %v384, 35
        %v386 = vpop.permute.xlu0 %385
        %vm388 = vcmask 412952
        %389 = vst.msk [vmem:[#allocation2 + $0x4] sm:$0xf] %vm388, %v386
        %v390 = vld [vmem:[%s152 + $0x9] sm:$0x1]
        %v391 = vld [vmem:[%s152 + $0x19] sm:$0x1]
        %v392 = vld [vmem:[%s152 + $0x29] sm:$0x1]
        %v393 = vld [vmem:[%s152 + $0x39] sm:$0x1]
        %v398 = vrot.slane %v391, 7
        %v399 = vsel %vm190, %v398, %v390
        %v400 = vsel %vm192, %v398, %v399
        %v401 = vrot.slane %v392, 6
        %v402 = vsel %vm195, %v401, %v400
        %v403 = vsel %vm197, %v401, %v402
        %v404 = vrot.slane %v393, 5
        %v405 = vsel %vm200, %v404, %v403
        %v406 = vsel %vm202, %v404, %v405
        %407 = vrot.lane.b32.xlu0 %v406, 53
        %v408 = vpop.permute.xlu0 %407
        %vm410 = vcmask 560552
        %411 = vst.msk [vmem:[#allocation2 + $0x4] sm:$0xf] %vm410, %v408
        %v412 = vld [vmem:[%s152 + $0xa] sm:$0x1]
        %v413 = vld [vmem:[%s152 + $0x1a] sm:$0x1]
        %v414 = vld [vmem:[%s152 + $0x2a] sm:$0x1]
        %v415 = vld [vmem:[%s152 + $0x3a] sm:$0x1]
        %v420 = vrot.slane %v413, 7
        %v421 = vsel %vm190, %v420, %v412
        %v422 = vsel %vm192, %v420, %v421
        %v423 = vrot.slane %v414, 6
        %v424 = vsel %vm195, %v423, %v422
        %v425 = vsel %vm197, %v423, %v424
        %v426 = vrot.slane %v415, 5
        %v427 = vsel %vm200, %v426, %v425
        %v428 = vsel %vm202, %v426, %v427
        %429 = vrot.lane.b32.xlu0 %v428, 71
        %v430 = vpop.permute.xlu0 %429
        %vm432 = vcmask 708152
        %433 = vst.msk [vmem:[#allocation2 + $0x4] sm:$0xf] %vm432, %v430
        %v434 = vld [vmem:[%s152 + $0xb] sm:$0x1]
        %v435 = vld [vmem:[%s152 + $0x1b] sm:$0x1]
        %v436 = vld [vmem:[%s152 + $0x2b] sm:$0x1]
        %v437 = vld [vmem:[%s152 + $0x3b] sm:$0x1]
        %v442 = vrot.slane %v435, 7
        %v443 = vsel %vm190, %v442, %v434
        %v444 = vsel %vm192, %v442, %v443
        %v445 = vrot.slane %v436, 6
        %v446 = vsel %vm195, %v445, %v444
        %v447 = vsel %vm197, %v445, %v446
        %v448 = vrot.slane %v437, 5
        %v449 = vsel %vm200, %v448, %v447
        %v450 = vsel %vm202, %v448, %v449
        %451 = vrot.lane.b32.xlu0 %v450, 89
        %v452 = vpop.permute.xlu0 %451
        %vm454 = vcmask 855752
        %455 = vst.msk [vmem:[#allocation2 + $0x4] sm:$0xf] %vm454, %v452
        %v456 = vld [vmem:[%s152 + $0xc] sm:$0x1]
        %v457 = vld [vmem:[%s152 + $0x1c] sm:$0x1]
        %v458 = vld [vmem:[%s152 + $0x2c] sm:$0x1]
        %v459 = vld [vmem:[%s152 + $0x3c] sm:$0x1]
        %v464 = vrot.slane %v457, 7
        %v465 = vsel %vm190, %v464, %v456
        %v466 = vsel %vm192, %v464, %v465
        %v467 = vrot.slane %v458, 6
        %v468 = vsel %vm195, %v467, %v466
        %v469 = vsel %vm197, %v467, %v468
        %v470 = vrot.slane %v459, 5
        %v471 = vsel %vm200, %v470, %v469
        %v472 = vsel %vm202, %v470, %v471
        %473 = vrot.lane.b32.xlu0 %v472, 107
        %v474 = vpop.permute.xlu0 %473
        %vm476 = vcmask 1003352
        %477 = vst.msk [vmem:[#allocation2 + $0x4] sm:$0xf] %vm476, %v474
        %v478 = vld [vmem:[%s152 + $0xd] sm:$0x1]
        %v479 = vld [vmem:[%s152 + $0x1d] sm:$0x1]
        %v480 = vld [vmem:[%s152 + $0x2d] sm:$0x1]
        %v481 = vld [vmem:[%s152 + $0x3d] sm:$0x1]
        %v486 = vrot.slane %v479, 7
        %v487 = vsel %vm190, %v486, %v478
        %v488 = vsel %vm192, %v486, %v487
        %v489 = vrot.slane %v480, 6
        %v490 = vsel %vm195, %v489, %v488
        %v491 = vsel %vm197, %v489, %v490
        %v492 = vrot.slane %v481, 5
        %v493 = vsel %vm200, %v492, %v491
        %v494 = vsel %vm202, %v492, %v493
        %495 = vrot.lane.b32.xlu0 %v494, 125
        %v496 = vpop.permute.xlu0 %495
        %v497 = vrot.slane %v496, 4
        %vm498 = vcmask 1022976
        %v499 = vsel %vm498, %v497, %v496
        %vm501 = vcmask 1044456
        %vm502 = vcmask 105476
        %vm503 = vmor %vm502, %vm501
        %504 = vst.msk [vmem:[#allocation2 + $0x4] sm:$0xff] %vm503, %v499
        %v505 = vld [vmem:[%s152 + $0xe] sm:$0x1]
        %v506 = vld [vmem:[%s152 + $0x1e] sm:$0x1]
        %v507 = vld [vmem:[%s152 + $0x2e] sm:$0x1]
        %v508 = vld [vmem:[%s152 + $0x3e] sm:$0x1]
        %v513 = vrot.slane %v506, 7
        %v514 = vsel %vm190, %v513, %v505
        %v515 = vsel %vm192, %v513, %v514
        %v516 = vrot.slane %v507, 6
        %v517 = vsel %vm195, %v516, %v515
        %v518 = vsel %vm197, %v516, %v517
        %v519 = vrot.slane %v508, 5
        %v520 = vsel %vm200, %v519, %v518
        %v521 = vsel %vm202, %v519, %v520
        %522 = vrot.lane.b32.xlu0 %v521, 15
        %v523 = vpop.permute.xlu0 %522
        %vm525 = vcmask 248952
        %526 = vst.msk [vmem:[#allocation2 + $0x8] sm:$0xf] %vm525, %v523
        %v527 = vld [vmem:[%s152 + $0xf] sm:$0x1]
        %v528 = vld [vmem:[%s152 + $0x1f] sm:$0x1]
        %v529 = vld [vmem:[%s152 + $0x2f] sm:$0x1]
        %v530 = vld [vmem:[%s152 + $0x3f] sm:$0x1]
        %v535 = vrot.slane %v528, 7
        %v536 = vsel %vm190, %v535, %v527
        %v537 = vsel %vm192, %v535, %v536
        %v538 = vrot.slane %v529, 6
        %v539 = vsel %vm195, %v538, %v537
        %v540 = vsel %vm197, %v538, %v539
        %v541 = vrot.slane %v530, 5
        %v542 = vsel %vm200, %v541, %v540
        %v543 = vsel %vm202, %v541, %v542
        %544 = vrot.lane.b32.xlu0 %v543, 33
        %v545 = vpop.permute.xlu0 %544
        %vm547 = vcmask 396552
        %548 = vst.msk [vmem:[#allocation2 + $0x8] sm:$0xf] %vm547, %v545
        %v549 = vld [vmem:[#allocation2] sm:$0xff]
        %v550 = vld [vmem:[#allocation2 + $0x8] sm:$0xf]
        %553 = vst [vmem:[#allocation1] ss:$2 sm:$0xff] %v549
        %s554 = scalar_lea.vmem [#allocation1], 16
        %555 = vst [vmem:[%s554] ss:$2 sm:$0xff] %v550
        %v556 = vld.sshfl [vmem:[#allocation1] sm:$0xff pattern:$0x75316420]
        %v557 = vld.sshfl [vmem:[#allocation1 + $0x8] sm:$0xff pattern:$0x75316420]
        %v558 = vld.sshfl [vmem:[#allocation1 + $0x10] sm:$0xff pattern:$0x75316420]
        %562 = vst [vmem:[#allocation3] sm:$0xf] %v556
        %563 = vst [vmem:[#allocation3 + $0x8] sm:$0xf] %v557
        %564 = vst [vmem:[#allocation3 + $0x10] sm:$0xf] %v558
        %v565 = vld [vmem:[#allocation2] sm:$0xff]
        %v566 = vld [vmem:[#allocation2 + $0x8] sm:$0xff]
        %s569 = scalar_lea.vmem [#allocation1], 1
        %570 = vst [vmem:[%s569] ss:$2 sm:$0xff] %v565
        %s571 = scalar_lea.vmem [#allocation1], 17
        %572 = vst [vmem:[%s571] ss:$2 sm:$0xff] %v566
        %v573 = vld.sshfl [vmem:[#allocation1] sm:$0xff pattern:$0x75316420]
        %v574 = vld.sshfl [vmem:[#allocation1 + $0x8] sm:$0xff pattern:$0x75316420]
        %v575 = vld.sshfl [vmem:[#allocation1 + $0x10] sm:$0xff pattern:$0x75316420]
        %v576 = vld.sshfl [vmem:[#allocation1 + $0x18] sm:$0xff pattern:$0x75316420]
        %577 = vrot.lane.b32.xlu0 %v573, 127
        %v578 = vpop.permute.xlu0 %577
        %579 = vrot.lane.b32.xlu0 %v574, 127
        %v580 = vpop.permute.xlu0 %579
        %581 = vrot.lane.b32.xlu0 %v575, 127
        %v582 = vpop.permute.xlu0 %581
        %583 = vrot.lane.b32.xlu0 %v576, 127
        %v584 = vpop.permute.xlu0 %583
        %v585 = vsel %vm339, %v578, %v580
        %v586 = vsel %vm339, %v580, %v582
        %v587 = vsel %vm339, %v582, %v584
        %591 = vst [vmem:[#allocation3] sm:$0xf0] %v585
        %592 = vst [vmem:[#allocation3 + $0x8] sm:$0xf0] %v586
        %593 = vst [vmem:[#allocation3 + $0x10] sm:$0xf0] %v587
        %v594 = vld [vmem:[#allocation2] sm:$0xff]
        %v595 = vld [vmem:[#allocation2 + $0x8] sm:$0xff]
        %598 = vst [vmem:[#allocation1] ss:$2 sm:$0xff] %v594
        %s599 = scalar_lea.vmem [#allocation1], 16
        %600 = vst [vmem:[%s599] ss:$2 sm:$0xff] %v595
        %v601 = vld.sshfl [vmem:[#allocation1] sm:$0xff pattern:$0x75316420]
        %v602 = vld.sshfl [vmem:[#allocation1 + $0x8] sm:$0xff pattern:$0x75316420]
        %v603 = vld.sshfl [vmem:[#allocation1 + $0x10] sm:$0xff pattern:$0x75316420]
        %v604 = vld.sshfl [vmem:[#allocation1 + $0x18] sm:$0xff pattern:$0x75316420]
        %605 = vrot.lane.b32.xlu0 %v601, 126
        %v606 = vpop.permute.xlu0 %605
        %607 = vrot.lane.b32.xlu0 %v602, 126
        %v608 = vpop.permute.xlu0 %607
        %609 = vrot.lane.b32.xlu0 %v603, 126
        %v610 = vpop.permute.xlu0 %609
        %611 = vrot.lane.b32.xlu0 %v604, 126
        %v612 = vpop.permute.xlu0 %611
        %vm613 = vcmask 1031168
        %v614 = vsel %vm613, %v606, %v608
        %v615 = vsel %vm613, %v608, %v610
        %v616 = vsel %vm613, %v610, %v612
        %620 = vst [vmem:[#allocation3 + $0x18] sm:$0xf] %v614
        %621 = vst [vmem:[#allocation3 + $0x20] sm:$0xf] %v615
        %622 = vst [vmem:[#allocation3 + $0x28] sm:$0xf] %v616
        %v623 = vld [vmem:[#allocation2] sm:$0xff]
        %v624 = vld [vmem:[#allocation2 + $0x8] sm:$0xff]
        %s627 = scalar_lea.vmem [#allocation1], 1
        %628 = vst [vmem:[%s627] ss:$2 sm:$0xff] %v623
        %s629 = scalar_lea.vmem [#allocation1], 17
        %630 = vst [vmem:[%s629] ss:$2 sm:$0xff] %v624
        %v631 = vld.sshfl [vmem:[#allocation1] sm:$0xff pattern:$0x75316420]
        %v632 = vld.sshfl [vmem:[#allocation1 + $0x8] sm:$0xff pattern:$0x75316420]
        %v633 = vld.sshfl [vmem:[#allocation1 + $0x10] sm:$0xff pattern:$0x75316420]
        %v634 = vld.sshfl [vmem:[#allocation1 + $0x18] sm:$0xff pattern:$0x75316420]
        %635 = vrot.lane.b32.xlu0 %v631, 110
        %v636 = vpop.permute.xlu0 %635
        %637 = vrot.lane.b32.xlu0 %v632, 110
        %v638 = vpop.permute.xlu0 %637
        %639 = vrot.lane.b32.xlu0 %v633, 110
        %v640 = vpop.permute.xlu0 %639
        %641 = vrot.lane.b32.xlu0 %v634, 110
        %v642 = vpop.permute.xlu0 %641
        %vm643 = vcmask 900096
        %v644 = vsel %vm643, %v636, %v638
        %v645 = vsel %vm643, %v638, %v640
        %v646 = vsel %vm643, %v640, %v642
        %650 = vst [vmem:[#allocation3 + $0x18] sm:$0xf0] %v644
        %651 = vst [vmem:[#allocation3 + $0x20] sm:$0xf0] %v645
        %652 = vst [vmem:[#allocation3 + $0x28] sm:$0xf0] %v646
        %v653 = vld [vmem:[#allocation2] sm:$0xff]
        %v654 = vld [vmem:[#allocation2 + $0x8] sm:$0xff]
        %657 = vst [vmem:[#allocation1] ss:$2 sm:$0xff] %v653
        %s658 = scalar_lea.vmem [#allocation1], 16
        %659 = vst [vmem:[%s658] ss:$2 sm:$0xff] %v654
        %v660 = vld.sshfl [vmem:[#allocation1] sm:$0xff pattern:$0x75316420]
        %v661 = vld.sshfl [vmem:[#allocation1 + $0x8] sm:$0xff pattern:$0x75316420]
        %v662 = vld.sshfl [vmem:[#allocation1 + $0x10] sm:$0xff pattern:$0x75316420]
        %v663 = vld.sshfl [vmem:[#allocation1 + $0x18] sm:$0xff pattern:$0x75316420]
        %664 = vrot.lane.b32.xlu0 %v660, 109
        %v665 = vpop.permute.xlu0 %664
        %666 = vrot.lane.b32.xlu0 %v661, 109
        %v667 = vpop.permute.xlu0 %666
        %668 = vrot.lane.b32.xlu0 %v662, 109
        %v669 = vpop.permute.xlu0 %668
        %670 = vrot.lane.b32.xlu0 %v663, 109
        %v671 = vpop.permute.xlu0 %670
        %vm672 = vcmask 891904
        %v673 = vsel %vm672, %v665, %v667
        %v674 = vsel %vm672, %v667, %v669
        %v675 = vsel %vm672, %v669, %v671
        %679 = vst [vmem:[#allocation3 + $0x30] sm:$0xf] %v673
        %680 = vst [vmem:[#allocation3 + $0x38] sm:$0xf] %v674
        %681 = vst [vmem:[#allocation3 + $0x40] sm:$0xf] %v675
        %v682 = vld [vmem:[#allocation2] sm:$0xff]
        %v683 = vld [vmem:[#allocation2 + $0x8] sm:$0xff]
        %s686 = scalar_lea.vmem [#allocation1], 1
        %687 = vst [vmem:[%s686] ss:$2 sm:$0xff] %v682
        %s688 = scalar_lea.vmem [#allocation1], 17
        %689 = vst [vmem:[%s688] ss:$2 sm:$0xff] %v683
        %v690 = vld.sshfl [vmem:[#allocation1] sm:$0xff pattern:$0x75316420]
        %v691 = vld.sshfl [vmem:[#allocation1 + $0x8] sm:$0xff pattern:$0x75316420]
        %v692 = vld.sshfl [vmem:[#allocation1 + $0x10] sm:$0xff pattern:$0x75316420]
        %v693 = vld.sshfl [vmem:[#allocation1 + $0x18] sm:$0xff pattern:$0x75316420]
        %694 = vrot.lane.b32.xlu0 %v690, 108
        %v695 = vpop.permute.xlu0 %694
        %696 = vrot.lane.b32.xlu0 %v691, 108
        %v697 = vpop.permute.xlu0 %696
        %698 = vrot.lane.b32.xlu0 %v692, 108
        %v699 = vpop.permute.xlu0 %698
        %700 = vrot.lane.b32.xlu0 %v693, 108
        %v701 = vpop.permute.xlu0 %700
        %vm702 = vcmask 883712
        %v703 = vsel %vm702, %v695, %v697
        %v704 = vsel %vm702, %v697, %v699
        %v705 = vsel %vm702, %v699, %v701
        %709 = vst [vmem:[#allocation3 + $0x30] sm:$0xf0] %v703
        %710 = vst [vmem:[#allocation3 + $0x38] sm:$0xf0] %v704
        %711 = vst [vmem:[#allocation3 + $0x40] sm:$0xf0] %v705
        %v712 = vld [vmem:[#allocation2] sm:$0xff]
        %v713 = vld [vmem:[#allocation2 + $0x8] sm:$0xff]
        %716 = vst [vmem:[#allocation1] ss:$2 sm:$0xff] %v712
        %s717 = scalar_lea.vmem [#allocation1], 16
        %718 = vst [vmem:[%s717] ss:$2 sm:$0xff] %v713
        %v719 = vld.sshfl [vmem:[#allocation1] sm:$0xff pattern:$0x75316420]
        %v720 = vld.sshfl [vmem:[#allocation1 + $0x8] sm:$0xff pattern:$0x75316420]
        %v721 = vld.sshfl [vmem:[#allocation1 + $0x10] sm:$0xff pattern:$0x75316420]
        %v722 = vld.sshfl [vmem:[#allocation1 + $0x18] sm:$0xff pattern:$0x75316420]
        %723 = vrot.lane.b32.xlu0 %v719, 92
        %v724 = vpop.permute.xlu0 %723
        %725 = vrot.lane.b32.xlu0 %v720, 92
        %v726 = vpop.permute.xlu0 %725
        %727 = vrot.lane.b32.xlu0 %v721, 92
        %v728 = vpop.permute.xlu0 %727
        %729 = vrot.lane.b32.xlu0 %v722, 92
        %v730 = vpop.permute.xlu0 %729
        %vm731 = vcmask 752640
        %v732 = vsel %vm731, %v724, %v726
        %v733 = vsel %vm731, %v726, %v728
        %v734 = vsel %vm731, %v728, %v730
        %738 = vst [vmem:[#allocation3 + $0x48] sm:$0xf] %v732
        %739 = vst [vmem:[#allocation3 + $0x50] sm:$0xf] %v733
        %740 = vst [vmem:[#allocation3 + $0x58] sm:$0xf] %v734
        %v741 = vld [vmem:[#allocation2] sm:$0xff]
        %v742 = vld [vmem:[#allocation2 + $0x8] sm:$0xff]
        %s745 = scalar_lea.vmem [#allocation1], 1
        %746 = vst [vmem:[%s745] ss:$2 sm:$0xff] %v741
        %s747 = scalar_lea.vmem [#allocation1], 17
        %748 = vst [vmem:[%s747] ss:$2 sm:$0xff] %v742
        %v749 = vld.sshfl [vmem:[#allocation1] sm:$0xff pattern:$0x75316420]
        %v750 = vld.sshfl [vmem:[#allocation1 + $0x8] sm:$0xff pattern:$0x75316420]
        %v751 = vld.sshfl [vmem:[#allocation1 + $0x10] sm:$0xff pattern:$0x75316420]
        %v752 = vld.sshfl [vmem:[#allocation1 + $0x18] sm:$0xff pattern:$0x75316420]
        %753 = vrot.lane.b32.xlu0 %v749, 91
        %v754 = vpop.permute.xlu0 %753
        %755 = vrot.lane.b32.xlu0 %v750, 91
        %v756 = vpop.permute.xlu0 %755
        %757 = vrot.lane.b32.xlu0 %v751, 91
        %v758 = vpop.permute.xlu0 %757
        %759 = vrot.lane.b32.xlu0 %v752, 91
        %v760 = vpop.permute.xlu0 %759
        %vm761 = vcmask 744448
        %v762 = vsel %vm761, %v754, %v756
        %v763 = vsel %vm761, %v756, %v758
        %v764 = vsel %vm761, %v758, %v760
        %768 = vst [vmem:[#allocation3 + $0x48] sm:$0xf0] %v762
        %769 = vst [vmem:[#allocation3 + $0x50] sm:$0xf0] %v763
        %770 = vst [vmem:[#allocation3 + $0x58] sm:$0xf0] %v764
        %v771 = vld [vmem:[#allocation2] sm:$0xff]
        %v772 = vld [vmem:[#allocation2 + $0x8] sm:$0xff]
        %775 = vst [vmem:[#allocation1] ss:$2 sm:$0xff] %v771
        %s776 = scalar_lea.vmem [#allocation1], 16
        %777 = vst [vmem:[%s776] ss:$2 sm:$0xff] %v772
        %v778 = vld.sshfl [vmem:[#allocation1] sm:$0xff pattern:$0x75316420]
        %v779 = vld.sshfl [vmem:[#allocation1 + $0x8] sm:$0xff pattern:$0x75316420]
        %v780 = vld.sshfl [vmem:[#allocation1 + $0x10] sm:$0xff pattern:$0x75316420]
        %v781 = vld.sshfl [vmem:[#allocation1 + $0x18] sm:$0xff pattern:$0x75316420]
        %782 = vrot.lane.b32.xlu0 %v778, 90
        %v783 = vpop.permute.xlu0 %782
        %784 = vrot.lane.b32.xlu0 %v779, 90
        %v785 = vpop.permute.xlu0 %784
        %786 = vrot.lane.b32.xlu0 %v780, 90
        %v787 = vpop.permute.xlu0 %786
        %788 = vrot.lane.b32.xlu0 %v781, 90
        %v789 = vpop.permute.xlu0 %788
        %vm790 = vcmask 736256
        %v791 = vsel %vm790, %v783, %v785
        %v792 = vsel %vm790, %v785, %v787
        %v793 = vsel %vm790, %v787, %v789
        %797 = vst [vmem:[#allocation3 + $0x60] sm:$0xf] %v791
        %798 = vst [vmem:[#allocation3 + $0x68] sm:$0xf] %v792
        %799 = vst [vmem:[#allocation3 + $0x70] sm:$0xf] %v793
        %v800 = vld [vmem:[#allocation7] sm:$0xff]
        %v801 = vld [vmem:[#allocation3] sm:$0xff]
        %v802 = vld [vmem:[#allocation3 + $0x8] sm:$0xff]
        %v803 = vld [vmem:[#allocation3 + $0x10] sm:$0xff]
        %v804 = vld [vmem:[#allocation3 + $0x18] sm:$0xff]
        %v805 = vld [vmem:[#allocation3 + $0x20] sm:$0xff]
        %v806 = vld [vmem:[#allocation3 + $0x28] sm:$0xff]
        %v807 = vld [vmem:[#allocation3 + $0x30] sm:$0xff]
        %v808 = vld [vmem:[#allocation3 + $0x38] sm:$0xff]
        %v809 = vld [vmem:[#allocation3 + $0x40] sm:$0xff]
        %v810 = vld [vmem:[#allocation3 + $0x48] sm:$0xff]
        %v811 = vld [vmem:[#allocation3 + $0x50] sm:$0xff]
        %v812 = vld [vmem:[#allocation3 + $0x58] sm:$0xff]
        %v813 = vld [vmem:[#allocation3 + $0x60] sm:$0xf]
        %v814 = vld [vmem:[#allocation3 + $0x68] sm:$0xf]
        %v815 = vld [vmem:[#allocation3 + $0x70] sm:$0xf]
        %vm816 = vcmask 293888
        %v818 = vsel %vm816, %v800, 0
        %vm820 = vcmask 1043456
        %v822 = vsel %vm820, %v813, 0
        %v825 = vsel %vm820, %v814, 0
        %v828 = vsel %vm820, %v815, 0
        %830 = vmatpush.msra.mxu0 0.0
        %831 = vmatpush.msra.mxu0 0.0
        %832 = vmatpush.msra.mxu0 0.0
        %833 = vmatpush.msra.mxu0 0.0
        %834 = vmatpush.msra.mxu0 0.0
        %835 = vmatpush.msra.mxu0 0.0
        %836 = vmatpush.msra.mxu0 0.0
        %837 = vmatpush.msra.mxu0 0.0
        %838 = vmatpush.msra.mxu0 0.0
        %839 = vmatpush.msra.mxu0 0.0
        %840 = vmatpush.msra.mxu0 0.0
        %841 = vmatpush.msra.mxu0 %v822
        %842 = vmatpush.msra.mxu0 %v810
        %843 = vmatpush.msra.mxu0 %v807
        %844 = vmatpush.msra.mxu0 %v804
        %845 = vmatpush.msra.mxu0 %v801
        %846 = vmatmul.f32.gmra.mxu0 %v818
        %v847 = vpop.f32.mrf.mxu0
        %v848 = vadd.f32 0.0, %v847
        %849 = vdwg.mxu0
        %850 = vmatpush.msra.mxu0 0.0
        %851 = vmatpush.msra.mxu0 0.0
        %852 = vmatpush.msra.mxu0 0.0
        %853 = vmatpush.msra.mxu0 0.0
        %854 = vmatpush.msra.mxu0 0.0
        %855 = vmatpush.msra.mxu0 0.0
        %856 = vmatpush.msra.mxu0 0.0
        %857 = vmatpush.msra.mxu0 0.0
        %858 = vmatpush.msra.mxu0 0.0
        %859 = vmatpush.msra.mxu0 0.0
        %860 = vmatpush.msra.mxu0 0.0
        %861 = vmatpush.msra.mxu0 %v825
        %862 = vmatpush.msra.mxu0 %v811
        %863 = vmatpush.msra.mxu0 %v808
        %864 = vmatpush.msra.mxu0 %v805
        %865 = vmatpush.msra.mxu0 %v802
        %866 = vmatmul.f32.gmra.mxu0 %v818
        %v867 = vpop.f32.mrf.mxu0
        %v868 = vadd.f32 0.0, %v867
        %869 = vdwg.mxu0
        %870 = vmatpush.msra.mxu0 0.0
        %871 = vmatpush.msra.mxu0 0.0
        %872 = vmatpush.msra.mxu0 0.0
        %873 = vmatpush.msra.mxu0 0.0
        %874 = vmatpush.msra.mxu0 0.0
        %875 = vmatpush.msra.mxu0 0.0
        %876 = vmatpush.msra.mxu0 0.0
        %877 = vmatpush.msra.mxu0 0.0
        %878 = vmatpush.msra.mxu0 0.0
        %879 = vmatpush.msra.mxu0 0.0
        %880 = vmatpush.msra.mxu0 0.0
        %881 = vmatpush.msra.mxu0 %v828
        %882 = vmatpush.msra.mxu0 %v812
        %883 = vmatpush.msra.mxu0 %v809
        %884 = vmatpush.msra.mxu0 %v806
        %885 = vmatpush.msra.mxu0 %v803
        %886 = vmatmul.f32.gmra.mxu0 %v818
        %v887 = vpop.f32.mrf.mxu0
        %v888 = vadd.f32 0.0, %v887
        %889 = vdwg.mxu0
        %vm890 = vcmask 130048
        %891 = vst.msk [vmem:[%s178] sm:$0xff] %vm890, %v848
        %893 = vrot.lane.b32.xlu0 %v848, 126
        %v894 = vpop.permute.xlu0 %893
        %vm896 = vcmask 261248
        %897 = vst.msk [vmem:[%s178] sm:$0xff] %vm896, %v894
        %898 = vrot.lane.b32.xlu0 %v848, 124
        %v899 = vpop.permute.xlu0 %898
        %vm901 = vcmask 392448
        %902 = vst.msk [vmem:[%s178] sm:$0xff] %vm901, %v899
        %903 = vrot.lane.b32.xlu0 %v848, 122
        %v904 = vpop.permute.xlu0 %903
        %vm906 = vcmask 523648
        %907 = vst.msk [vmem:[%s178] sm:$0xff] %vm906, %v904
        %908 = vrot.lane.b32.xlu0 %v848, 120
        %v909 = vpop.permute.xlu0 %908
        %vm911 = vcmask 654848
        %912 = vst.msk [vmem:[%s178] sm:$0xff] %vm911, %v909
        %913 = vrot.lane.b32.xlu0 %v848, 118
        %v914 = vpop.permute.xlu0 %913
        %vm916 = vcmask 786048
        %917 = vst.msk [vmem:[%s178] sm:$0xff] %vm916, %v914
        %918 = vrot.lane.b32.xlu0 %v848, 116
        %v919 = vpop.permute.xlu0 %918
        %vm921 = vcmask 917248
        %922 = vst.msk [vmem:[%s178] sm:$0xff] %vm921, %v919
        %924 = vrot.lane.b32.xlu0 %v848, 114
        %v925 = vpop.permute.xlu0 %924
        %926 = vrot.lane.b32.xlu0 %v868, 114
        %v927 = vpop.permute.xlu0 %926
        %vm928 = vcmask 932864
        %v929 = vsel %vm928, %v925, %v927
        %vm931 = vcmask 1048448
        %932 = vst.msk [vmem:[%s178] sm:$0xff] %vm931, %v929
        %933 = vrot.lane.b32.xlu0 %v868, 112
        %v934 = vpop.permute.xlu0 %933
        %936 = vst.msk [vmem:[%s178 + $0x8] sm:$0xff] %vm890, %v934
        %937 = vrot.lane.b32.xlu0 %v868, 110
        %v938 = vpop.permute.xlu0 %937
        %940 = vst.msk [vmem:[%s178 + $0x8] sm:$0xff] %vm896, %v938
        %941 = vrot.lane.b32.xlu0 %v868, 108
        %v942 = vpop.permute.xlu0 %941
        %944 = vst.msk [vmem:[%s178 + $0x8] sm:$0xff] %vm901, %v942
        %945 = vrot.lane.b32.xlu0 %v868, 106
        %v946 = vpop.permute.xlu0 %945
        %948 = vst.msk [vmem:[%s178 + $0x8] sm:$0xff] %vm906, %v946
        %949 = vrot.lane.b32.xlu0 %v868, 104
        %v950 = vpop.permute.xlu0 %949
        %952 = vst.msk [vmem:[%s178 + $0x8] sm:$0xff] %vm911, %v950
        %953 = vrot.lane.b32.xlu0 %v868, 102
        %v954 = vpop.permute.xlu0 %953
        %956 = vst.msk [vmem:[%s178 + $0x8] sm:$0xff] %vm916, %v954
        %958 = vrot.lane.b32.xlu0 %v868, 100
        %v959 = vpop.permute.xlu0 %958
        %960 = vrot.lane.b32.xlu0 %v888, 100
        %v961 = vpop.permute.xlu0 %960
        %vm962 = vcmask 818176
        %v963 = vsel %vm962, %v959, %v961
        %965 = vst.msk [vmem:[%s178 + $0x8] sm:$0xff] %vm921, %v963
        %966 = vrot.lane.b32.xlu0 %v888, 98
        %v967 = vpop.permute.xlu0 %966
        %969 = vst.msk [vmem:[%s178 + $0x8] sm:$0xff] %vm931, %v967
        %s970 = sand.u32 %s75, 1
        %s971 = scalar_lea.sflag [#allocation6], %s970
        %s972 = sand.u32 %s75, 1
        %s973 = smul.addr %s972, 16
        %s974 = scalar_lea.vmem [#allocation9], %s973
        // Predicated region
        $region37: #{tpu_custom_call.1} parent=27 // pred_check
          %p975 = pneg %p85
        $region38: #{tpu_custom_call.1} parent=27 // pred_check_branch
          %977 = sbr.rel (%p975) target = $region40
        $region39: #{tpu_custom_call.1} parent=27 // pred_region
          %979 = vsyncadd %s971, 0
          %s980 = smul.addr %s20, 2
          %s981 = smul.addr %s980, 8
          %s982 = scalar_lea.hbm %s2, %s981
          %s984 = sshll.u32 %s974, 4
          %s985 = int_to_ptr.vmem [resolvable:$true] %s984
          %s986 = sshll.u32 %s982, 4
          %s987 = int_to_ptr.hbm [resolvable:$true] %s986
          %989 = dma.vmem_to_hbm [thread:$0]  %s985, 256, %s987, %s971
        $region40: #{tpu_custom_call.1} parent=27 // pred_fallthru
          _
      $region28: #{tpu_custom_call.1} parent=5 // pred_fallthru
        _
      %p990 = scmp.le.s32.totalorder 2, %s15
      // Predicated region
      $region41: #{tpu_custom_call.1} parent=5 // pred_check
        %p991 = pneg %p990
      $region42: #{tpu_custom_call.1} parent=5 // pred_check_branch
        %993 = sbr.rel (%p991) target = $region44
      $region43: #{tpu_custom_call.1} parent=5 // pred_region
        %s994 = ssub.s32 %s15, 2
        // Predicated region
        $region45: #{tpu_custom_call.1} parent=43 // pred_check
          %p995 = pneg %p91
        $region46: #{tpu_custom_call.1} parent=43 // pred_check_branch
          %997 = sbr.rel (%p995) target = $region48
        $region47: #{tpu_custom_call.1} parent=43 // pred_region
          %s998 = sand.u32 %s76, 1
          %s999 = scalar_lea.sflag [#allocation6], %s998
          %s1000 = sand.u32 %s76, 1
          %s1001 = smul.addr %s1000, 16
          %s1002 = scalar_lea.vmem [#allocation9], %s1001
          %1004 = dma.done %s999, 256
        $region48: #{tpu_custom_call.1} parent=43 // pred_fallthru
          _
      $region44: #{tpu_custom_call.1} parent=5 // pred_fallthru
        _
    $region6: #{tpu_custom_call.1} parent=1 // loop_footer
      %s19 = sadd.s32 1, %s15
    $region7: #{tpu_custom_call.1} parent=1 // loop_footer_branch
      %14 = sbr.rel target = $region3
    $region8: #{tpu_custom_call.1} parent=1 // loop_exit
      _
    %1005 = vsyncpa [#allocation5], 1
    %s1006 = scalar_lea.sflag [#allocation5], 1
    %1007 = vsyncpa %s1006, 1
    %1008 = vsyncpa [#allocation8], 1
    %1009 = vsyncpa [#allocation6], 1
    %s1010 = scalar_lea.sflag [#allocation6], 1
    %1011 = vsyncpa %s1010, 1

</llo_original>
